<compile_context>
chip_gen: v7x
topology: tpu7x:2x2x1
jax: 0.10.0
libtpu: 0.0.40
codegen_flags: <defaults>
</compile_context>

<pallas_src>
import jax
import jax.numpy as jnp
from jax.experimental import pallas as pl
from jax.experimental.pallas import tpu as pltpu

HIDDEN = 1024        # fixed by nn.Linear(1024, 1024)
NUM_CLASSES = 2      # fixed by nn.Linear(1024, 2)
N_CORES = 2          # leading "parallel" grid axis (both TCs on v7x; sequential on v5e/v6e)
TN = 512             # dense-output column tile (2 tiles total, 1 per core)
assert HIDDEN % (N_CORES * TN) == 0
TILES_PER_CORE = HIDDEN // (N_CORES * TN)


def _cls_head_kernel(inp_hbm, w1_ref, b1_ref, w2_ref, o_ref, x_vmem, acc_ref):
    """One (core, column-tile) step of dense -> tanh -> out_proj partial.

    inp_hbm: [B, S, H] f32   raw HBM ref (memory_space=pl.ANY)
    w1_ref : [H, TN]   bf16  dense weight tile, pre-transposed [in, out] layout
    b1_ref : [1, TN]   f32   dense bias tile
    w2_ref : [TN, C]   f32   out_proj weight tile, [in, out] layout
    o_ref  : [1, B, C] f32   per-core partial logits (out_proj bias added in wrapper)
    x_vmem : [B, 1, H] f32   scratch: CLS-token rows
    acc_ref: [B, C]    f32   scratch: out_proj accumulator
    """
    j = pl.program_id(1)

    @pl.when(j == 0)
    def _():
        # Fold the CLS-token gather into the kernel: one strided DMA of
        # input[:, 0, :] (B rows of H, stride S*H) straight into VMEM (~32 KiB).
        pltpu.sync_copy(inp_hbm.at[:, 0:1, :], x_vmem)
        acc_ref[...] = jnp.zeros_like(acc_ref)

    # Dropout is identity in eval mode; nothing to do.
    # TODO(synk): training-mode dropout(p=0.1) would need pltpu.prng_seed /
    # prng_random_bits masking; only the eval-mode forward is implemented here.
    x = x_vmem[:, 0, :].astype(jnp.bfloat16)                            # [B, H]

    # dense (this column tile): native (M,K)x(K,N) MXU matmul, f32 accumulation.
    h = jnp.dot(x, w1_ref[...], preferred_element_type=jnp.float32)     # [B, TN]
    h = jnp.tanh(h + b1_ref[...])                                       # f32

    # out_proj partial contribution of this column tile.
    acc_ref[...] += jnp.dot(h, w2_ref[...], preferred_element_type=jnp.float32)

    @pl.when(j == pl.num_programs(1) - 1)
    def _():
        o_ref[0] = acc_ref[...]


def prepare_params(w_dense, b_dense, w_out, b_out):
    """One-time parameter preparation (outside the per-call hot path).

    - dense weight: transpose once to [in, out] (K, N) and cast once to bf16.
    - out_proj: tiny (8 KiB); transpose once to [in, out], keep f32 for numerics.
    """
    w1 = jnp.asarray(w_dense).T.astype(jnp.bfloat16)                 # [H, H] bf16
    b1 = jnp.asarray(b_dense).reshape(1, HIDDEN).astype(jnp.float32)  # [1, H]
    w2 = jnp.asarray(w_out).T.astype(jnp.float32)                     # [H, C]
    b2 = jnp.asarray(b_out).reshape(1, NUM_CLASSES).astype(jnp.float32)
    return w1, b1, w2, b2


def roberta_classification_head(inp, params):
    """inp: [B, S, H] float32; params from prepare_params(). Returns [B, 2] logits."""
    w1, b1, w2, b2 = params
    B = inp.shape[0]

    flops = 2 * B * HIDDEN * HIDDEN + 2 * B * HIDDEN * NUM_CLASSES
    bytes_accessed = (B * HIDDEN * 4                     # CLS rows (f32)
                      + HIDDEN * HIDDEN * 2              # dense weight (bf16)
                      + HIDDEN * 4                       # dense bias
                      + HIDDEN * NUM_CLASSES * 4         # out_proj weight
                      + N_CORES * B * NUM_CLASSES * 4)   # partial logits out

    partials = pl.pallas_call(
        _cls_head_kernel,
        out_shape=jax.ShapeDtypeStruct((N_CORES, B, NUM_CLASSES), jnp.float32),
        grid_spec=pltpu.PrefetchScalarGridSpec(
            num_scalar_prefetch=0,
            grid=(N_CORES, TILES_PER_CORE),
            in_specs=[
                pl.BlockSpec(memory_space=pl.ANY),                        # inp (raw HBM)
                pl.BlockSpec((HIDDEN, TN),
                             lambda c, j: (0, c * TILES_PER_CORE + j)),   # w1 tile
                pl.BlockSpec((1, TN),
                             lambda c, j: (0, c * TILES_PER_CORE + j)),   # b1 tile
                pl.BlockSpec((TN, NUM_CLASSES),
                             lambda c, j: (c * TILES_PER_CORE + j, 0)),   # w2 tile
            ],
            out_specs=pl.BlockSpec((1, B, NUM_CLASSES), lambda c, j: (c, 0, 0)),
            scratch_shapes=[
                pltpu.VMEM((B, 1, HIDDEN), jnp.float32),     # CLS rows
                pltpu.VMEM((B, NUM_CLASSES), jnp.float32),   # out_proj accumulator
            ],
        ),
        compiler_params=pltpu.CompilerParams(
            dimension_semantics=("parallel", "arbitrary"),
            vmem_limit_bytes=32 << 20,
        ),
        cost_estimate=pl.CostEstimate(
            flops=flops, transcendentals=B * HIDDEN, bytes_accessed=bytes_accessed),
    )(inp, w1, b1, w2)

    # Cross-core partial reduction + out_proj bias: one tiny fused XLA add (32 elems).
    return partials.sum(axis=0) + b2


def _reference(inp, w_dense, b_dense, w_out, b_out):
    x = inp[:, 0, :]
    x = jnp.tanh(x @ w_dense.T + b_dense)
    return x @ w_out.T + b_out


if __name__ == "__main__":
    key = jax.random.PRNGKey(0)
    k_in, k_w1, k_b1, k_w2, k_b2 = jax.random.split(key, 5)

    B, S = 8, 8  # small batch / seq; hidden fixed at 1024 by the module
    inp = jax.random.normal(k_in, (B, S, HIDDEN), jnp.float32)

    # Deterministic synthetic parameters (PyTorch Linear layout: [out, in]).
    w_dense = jax.random.normal(k_w1, (HIDDEN, HIDDEN), jnp.float32) * 0.02
    b_dense = jax.random.normal(k_b1, (HIDDEN,), jnp.float32) * 0.02
    w_out = jax.random.normal(k_w2, (NUM_CLASSES, HIDDEN), jnp.float32) * 0.02
    b_out = jax.random.normal(k_b2, (NUM_CLASSES,), jnp.float32) * 0.02

    # One-time parameter prep (transpose + bf16 cast outside the hot path).
    params = jax.block_until_ready(prepare_params(w_dense, b_dense, w_out, b_out))

    head = jax.jit(roberta_classification_head)
    logits = jax.block_until_ready(head(inp, params))

    ref = _reference(inp, w_dense, b_dense, w_out, b_out)
    assert logits.shape == (B, NUM_CLASSES), logits.shape
    # bf16 dense weight/activations -> slightly looser tolerance vs f32 reference.
    assert jnp.allclose(logits, ref, atol=1e-2, rtol=1e-2), \
        float(jnp.max(jnp.abs(logits - ref)))

    print("KERNEL_OK")
</pallas_src>

<mosaic_0001>
module attributes {stable_mosaic.version = 11 : i64} {
  func.func @_cls_head_kernel(%arg0: i32, %arg1: i32, %arg2: memref<8x8x1024xf32, #tpu.memory_space<any>>, %arg3: memref<1024x512xbf16, #tpu.memory_space<vmem>>, %arg4: memref<1x512xf32, #tpu.memory_space<vmem>>, %arg5: memref<512x2xf32, #tpu.memory_space<vmem>>, %arg6: memref<1x8x2xf32, #tpu.memory_space<vmem>>, %arg7: memref<8x1x1024xf32, #tpu.memory_space<vmem>>, %arg8: memref<8x2xf32, #tpu.memory_space<vmem>>) attributes {dimension_semantics = [#tpu.dimension_semantics<parallel>, #tpu.dimension_semantics<arbitrary>], iteration_bounds = array<i64: 2, 1>, scalar_prefetch = 0 : i64, scratch_operands = 2 : i64, tpu.core_type = #tpu.core_type<tc>, window_params = [{}, {transform_indices = @transform_1, window_bounds = array<i64: 1024, 512>}, {transform_indices = @transform_2, window_bounds = array<i64: 1, 512>}, {transform_indices = @transform_3, window_bounds = array<i64: 512, 2>}, {transform_indices = @transform_4, window_bounds = array<i64: 1, 8, 2>}]} {
    %c0_i32 = arith.constant 0 : i32
    %0 = arith.cmpi eq, %arg1, %c0_i32 : i32
    %1 = arith.extui %0 : i1 to i32
    %c0_i32_0 = arith.constant 0 : i32
    %2 = arith.cmpi ne, %1, %c0_i32_0 : i32
    scf.if %2 {
      "tpu.region"() ({
        %22 = tpu.sem_alloc : memref<!tpu.dma_semaphore, #tpu.memory_space<semaphore_mem>>
        %c0_i32_19 = arith.constant 0 : i32
        %c0_i32_20 = arith.constant 0 : i32
        %c0_i32_21 = arith.constant 0 : i32
        %23 = tpu.memref_slice %arg2[%c0_i32_19, %c0_i32_20, %c0_i32_21] : memref<8x8x1024xf32, #tpu.memory_space<any>> -> memref<8x1x1024xf32, #tpu.memory_space<any>>
        tpu.enqueue_dma source(%23 : memref<8x1x1024xf32, #tpu.memory_space<any>>) target(%arg7 : memref<8x1x1024xf32, #tpu.memory_space<vmem>>) target_semaphore(%22 : memref<!tpu.dma_semaphore, #tpu.memory_space<semaphore_mem>>)
        %c0_i32_22 = arith.constant 0 : i32
        %c0_i32_23 = arith.constant 0 : i32
        %c0_i32_24 = arith.constant 0 : i32
        %24 = tpu.memref_slice %arg2[%c0_i32_22, %c0_i32_23, %c0_i32_24] : memref<8x8x1024xf32, #tpu.memory_space<any>> -> memref<8x1x1024xf32, #tpu.memory_space<any>>
        tpu.wait_dma2 semaphore(%22 : memref<!tpu.dma_semaphore, #tpu.memory_space<semaphore_mem>>) src(%24 : memref<8x1x1024xf32, #tpu.memory_space<any>>) dst(%arg7 : memref<8x1x1024xf32, #tpu.memory_space<vmem>>)
        tpu.yield
      }) : () -> ()
      %cst_16 = arith.constant 0.000000e+00 : f32
      %20 = vector.broadcast %cst_16 : f32 to vector<8x2xf32>
      %c0_17 = arith.constant 0 : index
      %c0_18 = arith.constant 0 : index
      %21 = vector.load %arg8[%c0_17, %c0_18] : memref<8x2xf32, #tpu.memory_space<vmem>>, vector<8x2xf32>
      tpu.vector_store %arg8[%c0_17, %c0_18], %20 {strides = array<i32>} : memref<8x2xf32, #tpu.memory_space<vmem>>, vector<8x2xf32>,
    } else {
    }
    %c0 = arith.constant 0 : index
    %c0_1 = arith.constant 0 : index
    %c0_2 = arith.constant 0 : index
    %3 = vector.load %arg7[%c0, %c0_1, %c0_2] : memref<8x1x1024xf32, #tpu.memory_space<vmem>>, vector<8x1x1024xf32>
    %4 = vector.shape_cast %3 : vector<8x1x1024xf32> to vector<8x1024xf32>
    %5 = arith.truncf %4 : vector<8x1024xf32> to vector<8x1024xbf16>
    %c0_3 = arith.constant 0 : index
    %c0_4 = arith.constant 0 : index
    %6 = vector.load %arg3[%c0_3, %c0_4] : memref<1024x512xbf16, #tpu.memory_space<vmem>>, vector<1024x512xbf16>
    %cst = arith.constant dense<0.000000e+00> : vector<8x512xf32>
    %7 = tpu.matmul %5, %6, %cst {dimension_numbers = #tpu.dot_dimension_numbers<[1], [0], [0], [1], [0, 0, 1, 1], [], []>} : vector<8x1024xbf16>, vector<1024x512xbf16>, vector<8x512xf32> -> vector<8x512xf32>
    %c0_5 = arith.constant 0 : index
    %c0_6 = arith.constant 0 : index
    %8 = vector.load %arg4[%c0_5, %c0_6] : memref<1x512xf32, #tpu.memory_space<vmem>>, vector<1x512xf32>
    %9 = vector.broadcast %8 : vector<1x512xf32> to vector<8x512xf32>
    %10 = arith.addf %7, %9 : vector<8x512xf32>
    %11 = math.tanh %10 : vector<8x512xf32>
    %c0_7 = arith.constant 0 : index
    %c0_8 = arith.constant 0 : index
    %12 = vector.load %arg8[%c0_7, %c0_8] : memref<8x2xf32, #tpu.memory_space<vmem>>, vector<8x2xf32>
    %c0_9 = arith.constant 0 : index
    %c0_10 = arith.constant 0 : index
    %13 = vector.load %arg5[%c0_9, %c0_10] : memref<512x2xf32, #tpu.memory_space<vmem>>, vector<512x2xf32>
    %cst_11 = arith.constant dense<0.000000e+00> : vector<8x2xf32>
    %14 = tpu.matmul %11, %13, %cst_11 {dimension_numbers = #tpu.dot_dimension_numbers<[1], [0], [0], [1], [0, 0, 1, 1], [], []>} : vector<8x512xf32>, vector<512x2xf32>, vector<8x2xf32> -> vector<8x2xf32>
    %15 = arith.addf %12, %14 : vector<8x2xf32>
    %c0_12 = arith.constant 0 : index
    %c0_13 = arith.constant 0 : index
    %16 = vector.load %arg8[%c0_12, %c0_13] : memref<8x2xf32, #tpu.memory_space<vmem>>, vector<8x2xf32>
    tpu.vector_store %arg8[%c0_12, %c0_13], %15 {strides = array<i32>} : memref<8x2xf32, #tpu.memory_space<vmem>>, vector<8x2xf32>,
    %c0_i32_14 = arith.constant 0 : i32
    %17 = arith.cmpi eq, %arg1, %c0_i32_14 : i32
    %18 = arith.extui %17 : i1 to i32
    %c0_i32_15 = arith.constant 0 : i32
    %19 = arith.cmpi ne, %18, %c0_i32_15 : i32
    scf.if %19 {
      %c0_16 = arith.constant 0 : index
      %c0_17 = arith.constant 0 : index
      %20 = vector.load %arg8[%c0_16, %c0_17] : memref<8x2xf32, #tpu.memory_space<vmem>>, vector<8x2xf32>
      %c0_18 = arith.constant 0 : index
      %c0_19 = arith.constant 0 : index
      %c0_20 = arith.constant 0 : index
      %21 = vector.load %arg6[%c0_18, %c0_19, %c0_20] : memref<1x8x2xf32, #tpu.memory_space<vmem>>, vector<1x8x2xf32>
      %22 = vector.shape_cast %21 : vector<1x8x2xf32> to vector<8x2xf32>
      %23 = vector.shape_cast %20 : vector<8x2xf32> to vector<1x8x2xf32>
      tpu.vector_store %arg6[%c0_18, %c0_19, %c0_20], %23 {strides = array<i32>} : memref<1x8x2xf32, #tpu.memory_space<vmem>>, vector<1x8x2xf32>,
    } else {
    }
    return
  }
  func.func @transform_1(%arg0: i32, %arg1: i32) -> (i32, i32) {
    %c1_i32 = arith.constant 1 : i32
    %0 = arith.muli %arg0, %c1_i32 : i32
    %1 = arith.addi %0, %arg1 : i32
    %c0_i32 = arith.constant 0 : i32
    %c0_i32_0 = arith.constant 0 : i32
    return %c0_i32, %1 : i32, i32
  }
  func.func @transform_2(%arg0: i32, %arg1: i32) -> (i32, i32) {
    %c1_i32 = arith.constant 1 : i32
    %0 = arith.muli %arg0, %c1_i32 : i32
    %1 = arith.addi %0, %arg1 : i32
    %c0_i32 = arith.constant 0 : i32
    %c0_i32_0 = arith.constant 0 : i32
    return %c0_i32, %1 : i32, i32
  }
  func.func @transform_3(%arg0: i32, %arg1: i32) -> (i32, i32) {
    %c1_i32 = arith.constant 1 : i32
    %0 = arith.muli %arg0, %c1_i32 : i32
    %1 = arith.addi %0, %arg1 : i32
    %c0_i32 = arith.constant 0 : i32
    %c0_i32_0 = arith.constant 0 : i32
    return %1, %c0_i32 : i32, i32
  }
  func.func @transform_4(%arg0: i32, %arg1: i32) -> (i32, i32, i32) {
    %c0_i32 = arith.constant 0 : i32
    %c0_i32_0 = arith.constant 0 : i32
    %c0_i32_1 = arith.constant 0 : i32
    return %arg0, %c0_i32, %c0_i32_0 : i32, i32, i32
  }
}

</mosaic_0001>

<llo_original>
// kernel: roberta_classification_head.1
$region0: #{roberta_classification_head.1}
  #allocation0 [shape = 'u32[]', space=smem, size = 0x4, offset = 0x4, fixed_abs, tag = 'smem constant byte address 0x4 - core index']
  #allocation1 [shape = 'u32[144,128]{1,0:T(1,128)}', space=vmem, size = 0x12000, scoped, tag = 'internal scratch']
  #allocation2 [shape = 'f32[8,1,1024]{2,1,0:T(1,128)}', space=vmem, size = 0x8000, scoped, tag = 'scratch operand']
  #allocation3 [shape = 'f32[8,2]{1,0:T(8,128)}', space=vmem, size = 0x1000, scoped, tag = 'scratch operand']
  #allocation9 [shape = 's32[]', space=sflag, size = 0x4, offset = 0, fixed_abs, tag = 'sflag constant byte address 0x0 - dummy sync flag']
  %s0 = inlined_call_operand.hbm [shape: f32[8,8,1024], index: 0, kind: input, shape index: {}]
  %s1 = inlined_call_operand.hbm [shape: bf16[1024,1024], index: 1, kind: input, shape index: {}]
  %s2 = inlined_call_operand.hbm [shape: f32[1,1024], index: 2, kind: input, shape index: {}]
  %s3 = inlined_call_operand.vmem [shape: f32[1024,2], index: 3, kind: input, shape index: {}]
  %s4 = inlined_call_operand.vmem [shape: f32[2,8,2], index: 4, kind: output, shape index: {}]
  %s5 = sld [smem:[#allocation0]]
  $region62: #{roberta_classification_head.1} parent=0
    _
  %s7 = ssub.s32 1, %s5
  %s8 = scalar_select 0, %s7, %s5
  $region1: #{roberta_classification_head.1} parent=0
    #allocation4 [shape = 'u8[2097152]{0}', space=vmem, size = 0x200000, scoped, tag = 'input window, operand 1']
    #allocation5 [shape = 's32[2]{0}', space=sflag, size = 0x8, scoped, tag = 'scoped memory for roberta_classification_head.1']
    #allocation6 [shape = 'u8[4096]{0}', space=vmem, size = 0x1000, scoped, tag = 'input window, operand 2']
    #allocation7 [shape = 's32[2]{0}', space=sflag, size = 0x8, scoped, tag = 'scoped memory for roberta_classification_head.1']
    %9 = vsyncpa [#allocation5], 0
    %s10 = scalar_lea.sflag [#allocation5], 1
    %11 = vsyncpa %s10, 0
    %12 = vsyncpa [#allocation7], 0
    %s13 = scalar_lea.sflag [#allocation7], 1
    %14 = vsyncpa %s13, 0
    loop: start=0, step=1, limit=4
    $region2: #{roberta_classification_head.1} parent=1 // loop_pre_header
      _
    $region3: #{roberta_classification_head.1} parent=1 // loop_header
      %s16 = sphi 0, %s20
      %p17 = scmp.ge.s32.totalorder %s16, 4
      %s23 = sphi 0, %s35
      %s24 = sphi 0, %s31
      %s25 = sphi 0, %s23
      %s26 = sphi 0, %s24
      %s27 = sphi 0, %s25
      %s28 = sphi 0, %s26
      %s40 = sphi 0, %s42
      %s43 = sphi 0, %s40
      %s44 = sphi 0, %s43
      %s60 = sphi 0, %s44
      %s68 = sphi 0, %s70
      %s71 = sphi 0, %s68
      %s72 = sphi 0, %s71
      %s88 = sphi 0, %s72
      %s96 = sphi 0, %s98
      %s99 = sphi 0, %s96
      %s100 = sphi 0, %s99
      %s116 = sphi 0, %s100
      %s122 = sphi 0, %s124
      %s125 = sphi 0, %s122
      %s126 = sphi 0, %s125
      %s142 = sphi 0, %s126
    $region4: #{roberta_classification_head.1} parent=1 // loop_header_branch
      %19 = sbr.rel (%p17) target = $region8
    $region5: #{roberta_classification_head.1} parent=1 // loop_body
      %s21 = ssub.s32 %s16, 1
      %s22 = ssub.s32 %s16, 2
      %s29 = sadd.s32 1, %s24
      %p30 = scmp.ge.s32.totalorder %s29, 1
      %s31 = scalar_select %p30, 0, %s29
      %s32 = sadd.s32 1, %s23
      %s33 = scalar_select %p30, %s32, %s23
      %p34 = scmp.ge.s32.totalorder %s33, 2
      %s35 = scalar_select %p34, 0, %s33
      %s36 = sadd.s32 %s23, %s24
      %s37 = sadd.s32 %s35, %s31
      %s38 = ssub.s32 %s36, %s37
      %p39 = scmp.eq.s32.totalorder %s38, 0
      %s41 = sadd.s32 %s40, 1
      %s42 = scalar_select %p39, %s40, %s41
      %p45 = pneg %p39
      %p46 = scmp.eq.s32.totalorder %s16, 1
      %p47 = por %p45, %p46
      %p48 = scmp.ne.s32.totalorder %s40, %s43
      %p49 = scmp.eq.s32.totalorder %s16, 0
      %p50 = por %p48, %p49
      %p51 = scmp.ne.s32.totalorder %s40, %s43
      %p52 = scmp.eq.s32.totalorder %s21, 1
      %p53 = por %p51, %p52
      %p54 = scmp.ne.s32.totalorder %s43, %s44
      %p55 = scmp.eq.s32.totalorder %s21, 0
      %p56 = por %p54, %p55
      %p57 = scmp.ne.s32.totalorder %s43, %s44
      %p58 = scmp.eq.s32.totalorder %s22, 1
      %p59 = por %p57, %p58
      %p61 = scmp.ne.s32.totalorder %s44, %s60
      %p62 = scmp.eq.s32.totalorder %s22, 0
      %p63 = por %p61, %p62
      %s64 = sadd.s32 %s23, %s24
      %s65 = sadd.s32 %s35, %s31
      %s66 = ssub.s32 %s64, %s65
      %p67 = scmp.eq.s32.totalorder %s66, 0
      %s69 = sadd.s32 %s68, 1
      %s70 = scalar_select %p67, %s68, %s69
      %p73 = pneg %p67
      %p74 = scmp.eq.s32.totalorder %s16, 1
      %p75 = por %p73, %p74
      %p76 = scmp.ne.s32.totalorder %s68, %s71
      %p77 = scmp.eq.s32.totalorder %s16, 0
      %p78 = por %p76, %p77
      %p79 = scmp.ne.s32.totalorder %s68, %s71
      %p80 = scmp.eq.s32.totalorder %s21, 1
      %p81 = por %p79, %p80
      %p82 = scmp.ne.s32.totalorder %s71, %s72
      %p83 = scmp.eq.s32.totalorder %s21, 0
      %p84 = por %p82, %p83
      %p85 = scmp.ne.s32.totalorder %s71, %s72
      %p86 = scmp.eq.s32.totalorder %s22, 1
      %p87 = por %p85, %p86
      %p89 = scmp.ne.s32.totalorder %s72, %s88
      %p90 = scmp.eq.s32.totalorder %s22, 0
      %p91 = por %p89, %p90
      %s92 = sadd.s32 %s23, %s24
      %s93 = sadd.s32 %s35, %s31
      %s94 = ssub.s32 %s92, %s93
      %p95 = scmp.eq.s32.totalorder %s94, 0
      %s97 = sadd.s32 %s96, 1
      %s98 = scalar_select %p95, %s96, %s97
      %p101 = pneg %p95
      %p102 = scmp.eq.s32.totalorder %s16, 1
      %p103 = por %p101, %p102
      %p104 = scmp.ne.s32.totalorder %s96, %s99
      %p105 = scmp.eq.s32.totalorder %s16, 0
      %p106 = por %p104, %p105
      %p107 = scmp.ne.s32.totalorder %s96, %s99
      %p108 = scmp.eq.s32.totalorder %s21, 1
      %p109 = por %p107, %p108
      %p110 = scmp.ne.s32.totalorder %s99, %s100
      %p111 = scmp.eq.s32.totalorder %s21, 0
      %p112 = por %p110, %p111
      %p113 = scmp.ne.s32.totalorder %s99, %s100
      %p114 = scmp.eq.s32.totalorder %s22, 1
      %p115 = por %p113, %p114
      %p117 = scmp.ne.s32.totalorder %s100, %s116
      %p118 = scmp.eq.s32.totalorder %s22, 0
      %p119 = por %p117, %p118
      %s120 = ssub.s32 %s23, %s35
      %p121 = scmp.eq.s32.totalorder %s120, 0
      %s123 = sadd.s32 %s122, 1
      %s124 = scalar_select %p121, %s122, %s123
      %p127 = pneg %p121
      %p128 = scmp.eq.s32.totalorder %s16, 1
      %p129 = por %p127, %p128
      %p130 = scmp.ne.s32.totalorder %s122, %s125
      %p131 = scmp.eq.s32.totalorder %s16, 0
      %p132 = por %p130, %p131
      %p133 = scmp.ne.s32.totalorder %s122, %s125
      %p134 = scmp.eq.s32.totalorder %s21, 1
      %p135 = por %p133, %p134
      %p136 = scmp.ne.s32.totalorder %s125, %s126
      %p137 = scmp.eq.s32.totalorder %s21, 0
      %p138 = por %p136, %p137
      %p139 = scmp.ne.s32.totalorder %s125, %s126
      %p140 = scmp.eq.s32.totalorder %s22, 1
      %p141 = por %p139, %p140
      %p143 = scmp.ne.s32.totalorder %s126, %s142
      %p144 = scmp.eq.s32.totalorder %s22, 0
      %p145 = por %p143, %p144
      %p146 = scmp.le.s32.totalorder 1, %s16
      %p147 = scmp.lt.s32.totalorder %s16, 3
      %p148 = pnand %p146, %p147
      %p149 = pneg %p148
      // Predicated region
      $region9: #{roberta_classification_head.1} parent=5 // pred_check
        _
      $region10: #{roberta_classification_head.1} parent=5 // pred_check_branch
        %151 = sbr.rel (%p148) target = $region12
      $region11: #{roberta_classification_head.1} parent=5 // pred_region
        %s152 = ssub.s32 %s16, 1
      $region12: #{roberta_classification_head.1} parent=5 // pred_fallthru
        _
      %p153 = scmp.lt.s32.totalorder %s16, 2
      // Predicated region
      $region13: #{roberta_classification_head.1} parent=5 // pred_check
        %p154 = pneg %p153
      $region14: #{roberta_classification_head.1} parent=5 // pred_check_branch
        %156 = sbr.rel (%p154) target = $region16
      $region15: #{roberta_classification_head.1} parent=5 // pred_region
        // Predicated region
        $region17: #{roberta_classification_head.1} parent=15 // pred_check
          %p157 = pneg %p50
        $region18: #{roberta_classification_head.1} parent=15 // pred_check_branch
          %159 = sbr.rel (%p157) target = $region20
        $region19: #{roberta_classification_head.1} parent=15 // pred_region
          %s160 = sand.u32 %s40, 1
          %s161 = scalar_lea.sflag [#allocation5], %s160
          %s162 = sand.u32 %s40, 1
          %s163 = smul.addr %s162, 2048
          %s164 = scalar_lea.vmem [#allocation4], %s163
          %s165 = sadd.s32 %s23, %s24
          %s166 = smul.u32 4, %s165
          %s168 = ssub.s32 32768, 32768
          %169 = vsyncadd %s161, %s168
          %s170 = smul.addr %s166, 64
          %s171 = scalar_lea.hbm %s1, %s170
          %s172 = sshll.u32 %s164, 4
          %s173 = int_to_ptr.vmem [resolvable:$true] %s172
          %178 = dma.hbm_to_vmem [thread:$0]  %s171, 32768, %s173, %s161, 512, 256, 16
        $region20: #{roberta_classification_head.1} parent=15 // pred_fallthru
          _
        // Predicated region
        $region21: #{roberta_classification_head.1} parent=15 // pred_check
          %p179 = pneg %p78
        $region22: #{roberta_classification_head.1} parent=15 // pred_check_branch
          %181 = sbr.rel (%p179) target = $region24
        $region23: #{roberta_classification_head.1} parent=15 // pred_region
          %s182 = sand.u32 %s68, 1
          %s183 = scalar_lea.sflag [#allocation7], %s182
          %s184 = sand.u32 %s68, 1
          %s185 = smul.addr %s184, 4
          %s186 = scalar_lea.vmem [#allocation6], %s185
          %s187 = sadd.s32 %s23, %s24
          %s188 = smul.u32 4, %s187
          %s190 = ssub.s32 64, 64
          %191 = vsyncadd %s183, %s190
          %s192 = smul.addr %s188, 16
          %s193 = scalar_lea.hbm %s2, %s192
          %s195 = sshll.u32 %s186, 4
          %s196 = int_to_ptr.vmem [resolvable:$true] %s195
          %198 = dma.hbm_to_vmem [thread:$0]  %s193, 64, %s196, %s183
        $region24: #{roberta_classification_head.1} parent=15 // pred_fallthru
          _
        // Predicated region
        $region25: #{roberta_classification_head.1} parent=15 // pred_check
          %p199 = pneg %p106
        $region26: #{roberta_classification_head.1} parent=15 // pred_check_branch
          %201 = sbr.rel (%p199) target = $region28
        $region27: #{roberta_classification_head.1} parent=15 // pred_region
          %s202 = sadd.s32 %s23, %s24
          %s203 = smul.u32 64, %s202
          %p204 = scmp.lt.s32.totalorder %s203, 127
          %s205 = scalar_select %p204, %s203, 127
          %s206 = smul.addr %s205, 8
          %s207 = scalar_lea.vmem %s3, %s206
          %s208 = sadd.s32 %s23, %s24
          %s209 = smul.u32 64, %s208
        $region28: #{roberta_classification_head.1} parent=15 // pred_fallthru
          _
      $region16: #{roberta_classification_head.1} parent=5 // pred_fallthru
        _
      %p210 = scmp.le.s32.totalorder 1, %s16
      %p211 = scmp.lt.s32.totalorder %s16, 3
      %p212 = pnand %p210, %p211
      %p213 = pneg %p212
      // Predicated region
      $region29: #{roberta_classification_head.1} parent=5 // pred_check
        _
      $region30: #{roberta_classification_head.1} parent=5 // pred_check_branch
        %215 = sbr.rel (%p212) target = $region32
      $region31: #{roberta_classification_head.1} parent=5 // pred_region
        %s216 = ssub.s32 %s16, 1
        %s217 = sand.u32 %s43, 1
        %s218 = scalar_lea.sflag [#allocation5], %s217
        %s219 = sand.u32 %s43, 1
        %s220 = smul.addr %s219, 2048
        %s221 = scalar_lea.vmem [#allocation4], %s220
        // Predicated region
        $region33: #{roberta_classification_head.1} parent=31 // pred_check
          %p222 = pneg %p56
        $region34: #{roberta_classification_head.1} parent=31 // pred_check_branch
          %224 = sbr.rel (%p222) target = $region36
        $region35: #{roberta_classification_head.1} parent=31 // pred_region
          %225 = dma.done %s218, 32768
        $region36: #{roberta_classification_head.1} parent=31 // pred_fallthru
          _
        %s226 = sand.u32 %s71, 1
        %s227 = scalar_lea.sflag [#allocation7], %s226
        %s228 = sand.u32 %s71, 1
        %s229 = smul.addr %s228, 4
        %s230 = scalar_lea.vmem [#allocation6], %s229
        // Predicated region
        $region37: #{roberta_classification_head.1} parent=31 // pred_check
          %p231 = pneg %p84
        $region38: #{roberta_classification_head.1} parent=31 // pred_check_branch
          %233 = sbr.rel (%p231) target = $region40
        $region39: #{roberta_classification_head.1} parent=31 // pred_region
          %234 = dma.done %s227, 64
        $region40: #{roberta_classification_head.1} parent=31 // pred_fallthru
          _
        %s235 = sand.u32 %s43, 1
        %s236 = scalar_lea.sflag [#allocation5], %s235
        %s237 = sand.u32 %s43, 1
        %s238 = smul.addr %s237, 2048
        %s239 = scalar_lea.vmem [#allocation4], %s238
        %p240 = pneg %p56
        %p241 = pneg %p53
        %s242 = sand.u32 %s71, 1
        %s243 = scalar_lea.sflag [#allocation7], %s242
        %s244 = sand.u32 %s71, 1
        %s245 = smul.addr %s244, 4
        %s246 = scalar_lea.vmem [#allocation6], %s245
        %p247 = pneg %p84
        %p248 = pneg %p81
        %s249 = sadd.s32 %s25, %s26
        %s250 = smul.u32 64, %s249
        %p251 = scmp.lt.s32.totalorder %s250, 127
        %s252 = scalar_select %p251, %s250, 127
        %s253 = smul.addr %s252, 8
        %s254 = scalar_lea.vmem %s3, %s253
        %p255 = pneg %p112
        %p256 = pneg %p109
        %p257 = pneg %p138
        %p258 = pneg %p135
        %p259 = scmp.lt.s32.totalorder %s25, 1
        %s260 = scalar_select %p259, %s25, 1
        %s261 = smul.addr %s260, 8
        %s262 = scalar_lea.vmem %s4, %s261
        %s263 = sadd.s32 %s25, %s26
        %s264 = smul.u32 4, %s263
        %s265 = sadd.s32 %s25, %s26
        %s266 = smul.u32 4, %s265
        %s267 = sadd.s32 %s25, %s26
        %s268 = smul.u32 64, %s267
        %p269 = scmp.lt.s32.totalorder %s268, 127
        %s270 = scalar_select %p269, %s268, 127
        %s271 = smul.addr %s270, 8
        %s272 = scalar_lea.vmem %s3, %s271
        %s273 = sadd.s32 %s25, %s26
        %s274 = smul.u32 64, %s273
        %p275 = scmp.lt.s32.totalorder %s25, 1
        %s276 = scalar_select %p275, %s25, 1
        %s277 = smul.addr %s276, 8
        %s278 = scalar_lea.vmem %s4, %s277
        %p279 = scmp.eq.s32.totalorder %s26, 0
        // Predicated region
        $region41: #{roberta_classification_head.1} parent=31 // pred_check
          %p280 = pneg %p279
        $region42: #{roberta_classification_head.1} parent=31 // pred_check_branch
          %282 = sbr.rel (%p280) target = $region44
        $region43: #{roberta_classification_head.1} parent=31 // pred_region
          $region45: #{roberta_classification_head.1} parent=43
            #allocation8 [shape = 's32[1]{0}', space=sflag, size = 0x4, scoped, tag = 'scoped memory for roberta_classification_head.1']
            %s284 = sshll.u32 [#allocation2], 4
            %s285 = int_to_ptr.vmem [resolvable:$true] %s284
            %287 = dma.hbm_to_vmem [thread:$0]  %s0, 1024, %s285, [#allocation8], 128, 16, 1
            %s288 = smul.u32 8, 1
            %s289 = smul.u32 %s288, 8
            %s290 = sshll.u32 %s289, 4
            %291 = dma.done [#allocation8], %s290
          %vm292 = vcmask 15360
          %293 = vst.msk [vmem:[#allocation3] sm:$0xff] %vm292, 0.0
        $region44: #{roberta_classification_head.1} parent=31 // pred_fallthru
          _
        %v294 = vld [vmem:[#allocation2] sm:$0xff]
        %v295 = vld [vmem:[#allocation2 + $0x8] sm:$0xff]
        %v296 = vld [vmem:[#allocation2 + $0x10] sm:$0xff]
        %v297 = vld [vmem:[#allocation2 + $0x18] sm:$0xff]
        %v298 = vld [vmem:[#allocation2 + $0x20] sm:$0xff]
        %v299 = vld [vmem:[#allocation2 + $0x28] sm:$0xff]
        %v300 = vld [vmem:[#allocation2 + $0x30] sm:$0xff]
        %v301 = vld [vmem:[#allocation2 + $0x38] sm:$0xff]
        %v310 = vlaneseq
        %v311 = vshrl.u32 %v310, 7
        %v312 = vsub.s32 0, %v311
        %v313 = vrot.slane %v294, %v312
        %v314 = vlaneseq
        %v315 = vshrl.u32 %v314, 7
        %v316 = vsub.s32 1, %v315
        %v317 = vrot.slane %v294, %v316
        %v318 = vlaneseq
        %v319 = vshrl.u32 %v318, 7
        %v320 = vsub.s32 2, %v319
        %v321 = vrot.slane %v294, %v320
        %v322 = vlaneseq
        %v323 = vshrl.u32 %v322, 7
        %v324 = vsub.s32 3, %v323
        %v325 = vrot.slane %v294, %v324
        %v326 = vlaneseq
        %v327 = vshrl.u32 %v326, 7
        %v328 = vsub.s32 4, %v327
        %v329 = vrot.slane %v294, %v328
        %v330 = vlaneseq
        %v331 = vshrl.u32 %v330, 7
        %v332 = vsub.s32 5, %v331
        %v333 = vrot.slane %v294, %v332
        %v334 = vlaneseq
        %v335 = vshrl.u32 %v334, 7
        %v336 = vsub.s32 6, %v335
        %v337 = vrot.slane %v294, %v336
        %v338 = vlaneseq
        %v339 = vshrl.u32 %v338, 7
        %v340 = vsub.s32 7, %v339
        %v341 = vrot.slane %v294, %v340
        %v342 = vlaneseq
        %v343 = vshrl.u32 %v342, 7
        %v344 = vsub.s32 0, %v343
        %v345 = vrot.slane %v295, %v344
        %v346 = vlaneseq
        %v347 = vshrl.u32 %v346, 7
        %v348 = vsub.s32 1, %v347
        %v349 = vrot.slane %v295, %v348
        %v350 = vlaneseq
        %v351 = vshrl.u32 %v350, 7
        %v352 = vsub.s32 2, %v351
        %v353 = vrot.slane %v295, %v352
        %v354 = vlaneseq
        %v355 = vshrl.u32 %v354, 7
        %v356 = vsub.s32 3, %v355
        %v357 = vrot.slane %v295, %v356
        %v358 = vlaneseq
        %v359 = vshrl.u32 %v358, 7
        %v360 = vsub.s32 4, %v359
        %v361 = vrot.slane %v295, %v360
        %v362 = vlaneseq
        %v363 = vshrl.u32 %v362, 7
        %v364 = vsub.s32 5, %v363
        %v365 = vrot.slane %v295, %v364
        %v366 = vlaneseq
        %v367 = vshrl.u32 %v366, 7
        %v368 = vsub.s32 6, %v367
        %v369 = vrot.slane %v295, %v368
        %v370 = vlaneseq
        %v371 = vshrl.u32 %v370, 7
        %v372 = vsub.s32 7, %v371
        %v373 = vrot.slane %v295, %v372
        %v374 = vlaneseq
        %v375 = vshrl.u32 %v374, 7
        %v376 = vsub.s32 0, %v375
        %v377 = vrot.slane %v296, %v376
        %v378 = vlaneseq
        %v379 = vshrl.u32 %v378, 7
        %v380 = vsub.s32 1, %v379
        %v381 = vrot.slane %v296, %v380
        %v382 = vlaneseq
        %v383 = vshrl.u32 %v382, 7
        %v384 = vsub.s32 2, %v383
        %v385 = vrot.slane %v296, %v384
        %v386 = vlaneseq
        %v387 = vshrl.u32 %v386, 7
        %v388 = vsub.s32 3, %v387
        %v389 = vrot.slane %v296, %v388
        %v390 = vlaneseq
        %v391 = vshrl.u32 %v390, 7
        %v392 = vsub.s32 4, %v391
        %v393 = vrot.slane %v296, %v392
        %v394 = vlaneseq
        %v395 = vshrl.u32 %v394, 7
        %v396 = vsub.s32 5, %v395
        %v397 = vrot.slane %v296, %v396
        %v398 = vlaneseq
        %v399 = vshrl.u32 %v398, 7
        %v400 = vsub.s32 6, %v399
        %v401 = vrot.slane %v296, %v400
        %v402 = vlaneseq
        %v403 = vshrl.u32 %v402, 7
        %v404 = vsub.s32 7, %v403
        %v405 = vrot.slane %v296, %v404
        %v406 = vlaneseq
        %v407 = vshrl.u32 %v406, 7
        %v408 = vsub.s32 0, %v407
        %v409 = vrot.slane %v297, %v408
        %v410 = vlaneseq
        %v411 = vshrl.u32 %v410, 7
        %v412 = vsub.s32 1, %v411
        %v413 = vrot.slane %v297, %v412
        %v414 = vlaneseq
        %v415 = vshrl.u32 %v414, 7
        %v416 = vsub.s32 2, %v415
        %v417 = vrot.slane %v297, %v416
        %v418 = vlaneseq
        %v419 = vshrl.u32 %v418, 7
        %v420 = vsub.s32 3, %v419
        %v421 = vrot.slane %v297, %v420
        %v422 = vlaneseq
        %v423 = vshrl.u32 %v422, 7
        %v424 = vsub.s32 4, %v423
        %v425 = vrot.slane %v297, %v424
        %v426 = vlaneseq
        %v427 = vshrl.u32 %v426, 7
        %v428 = vsub.s32 5, %v427
        %v429 = vrot.slane %v297, %v428
        %v430 = vlaneseq
        %v431 = vshrl.u32 %v430, 7
        %v432 = vsub.s32 6, %v431
        %v433 = vrot.slane %v297, %v432
        %v434 = vlaneseq
        %v435 = vshrl.u32 %v434, 7
        %v436 = vsub.s32 7, %v435
        %v437 = vrot.slane %v297, %v436
        %v438 = vlaneseq
        %v439 = vshrl.u32 %v438, 7
        %v440 = vsub.s32 0, %v439
        %v441 = vrot.slane %v298, %v440
        %v442 = vlaneseq
        %v443 = vshrl.u32 %v442, 7
        %v444 = vsub.s32 1, %v443
        %v445 = vrot.slane %v298, %v444
        %v446 = vlaneseq
        %v447 = vshrl.u32 %v446, 7
        %v448 = vsub.s32 2, %v447
        %v449 = vrot.slane %v298, %v448
        %v450 = vlaneseq
        %v451 = vshrl.u32 %v450, 7
        %v452 = vsub.s32 3, %v451
        %v453 = vrot.slane %v298, %v452
        %v454 = vlaneseq
        %v455 = vshrl.u32 %v454, 7
        %v456 = vsub.s32 4, %v455
        %v457 = vrot.slane %v298, %v456
        %v458 = vlaneseq
        %v459 = vshrl.u32 %v458, 7
        %v460 = vsub.s32 5, %v459
        %v461 = vrot.slane %v298, %v460
        %v462 = vlaneseq
        %v463 = vshrl.u32 %v462, 7
        %v464 = vsub.s32 6, %v463
        %v465 = vrot.slane %v298, %v464
        %v466 = vlaneseq
        %v467 = vshrl.u32 %v466, 7
        %v468 = vsub.s32 7, %v467
        %v469 = vrot.slane %v298, %v468
        %v470 = vlaneseq
        %v471 = vshrl.u32 %v470, 7
        %v472 = vsub.s32 0, %v471
        %v473 = vrot.slane %v299, %v472
        %v474 = vlaneseq
        %v475 = vshrl.u32 %v474, 7
        %v476 = vsub.s32 1, %v475
        %v477 = vrot.slane %v299, %v476
        %v478 = vlaneseq
        %v479 = vshrl.u32 %v478, 7
        %v480 = vsub.s32 2, %v479
        %v481 = vrot.slane %v299, %v480
        %v482 = vlaneseq
        %v483 = vshrl.u32 %v482, 7
        %v484 = vsub.s32 3, %v483
        %v485 = vrot.slane %v299, %v484
        %v486 = vlaneseq
        %v487 = vshrl.u32 %v486, 7
        %v488 = vsub.s32 4, %v487
        %v489 = vrot.slane %v299, %v488
        %v490 = vlaneseq
        %v491 = vshrl.u32 %v490, 7
        %v492 = vsub.s32 5, %v491
        %v493 = vrot.slane %v299, %v492
        %v494 = vlaneseq
        %v495 = vshrl.u32 %v494, 7
        %v496 = vsub.s32 6, %v495
        %v497 = vrot.slane %v299, %v496
        %v498 = vlaneseq
        %v499 = vshrl.u32 %v498, 7
        %v500 = vsub.s32 7, %v499
        %v501 = vrot.slane %v299, %v500
        %v502 = vlaneseq
        %v503 = vshrl.u32 %v502, 7
        %v504 = vsub.s32 0, %v503
        %v505 = vrot.slane %v300, %v504
        %v506 = vlaneseq
        %v507 = vshrl.u32 %v506, 7
        %v508 = vsub.s32 1, %v507
        %v509 = vrot.slane %v300, %v508
        %v510 = vlaneseq
        %v511 = vshrl.u32 %v510, 7
        %v512 = vsub.s32 2, %v511
        %v513 = vrot.slane %v300, %v512
        %v514 = vlaneseq
        %v515 = vshrl.u32 %v514, 7
        %v516 = vsub.s32 3, %v515
        %v517 = vrot.slane %v300, %v516
        %v518 = vlaneseq
        %v519 = vshrl.u32 %v518, 7
        %v520 = vsub.s32 4, %v519
        %v521 = vrot.slane %v300, %v520
        %v522 = vlaneseq
        %v523 = vshrl.u32 %v522, 7
        %v524 = vsub.s32 5, %v523
        %v525 = vrot.slane %v300, %v524
        %v526 = vlaneseq
        %v527 = vshrl.u32 %v526, 7
        %v528 = vsub.s32 6, %v527
        %v529 = vrot.slane %v300, %v528
        %v530 = vlaneseq
        %v531 = vshrl.u32 %v530, 7
        %v532 = vsub.s32 7, %v531
        %v533 = vrot.slane %v300, %v532
        %v534 = vlaneseq
        %v535 = vshrl.u32 %v534, 7
        %v536 = vsub.s32 0, %v535
        %v537 = vrot.slane %v301, %v536
        %v538 = vlaneseq
        %v539 = vshrl.u32 %v538, 7
        %v540 = vsub.s32 1, %v539
        %v541 = vrot.slane %v301, %v540
        %v542 = vlaneseq
        %v543 = vshrl.u32 %v542, 7
        %v544 = vsub.s32 2, %v543
        %v545 = vrot.slane %v301, %v544
        %v546 = vlaneseq
        %v547 = vshrl.u32 %v546, 7
        %v548 = vsub.s32 3, %v547
        %v549 = vrot.slane %v301, %v548
        %v550 = vlaneseq
        %v551 = vshrl.u32 %v550, 7
        %v552 = vsub.s32 4, %v551
        %v553 = vrot.slane %v301, %v552
        %v554 = vlaneseq
        %v555 = vshrl.u32 %v554, 7
        %v556 = vsub.s32 5, %v555
        %v557 = vrot.slane %v301, %v556
        %v558 = vlaneseq
        %v559 = vshrl.u32 %v558, 7
        %v560 = vsub.s32 6, %v559
        %v561 = vrot.slane %v301, %v560
        %v562 = vlaneseq
        %v563 = vshrl.u32 %v562, 7
        %v564 = vsub.s32 7, %v563
        %v565 = vrot.slane %v301, %v564
        %v630 = vpack.c.bf16 %v313, %v313
        %v631 = vpack.c.bf16 %v317, %v317
        %v632 = vpack.c.bf16 %v321, %v321
        %v633 = vpack.c.bf16 %v325, %v325
        %v634 = vpack.c.bf16 %v329, %v329
        %v635 = vpack.c.bf16 %v333, %v333
        %v636 = vpack.c.bf16 %v337, %v337
        %v637 = vpack.c.bf16 %v341, %v341
        %v638 = vpack.c.bf16 %v345, %v345
        %v639 = vpack.c.bf16 %v349, %v349
        %v640 = vpack.c.bf16 %v353, %v353
        %v641 = vpack.c.bf16 %v357, %v357
        %v642 = vpack.c.bf16 %v361, %v361
        %v643 = vpack.c.bf16 %v365, %v365
        %v644 = vpack.c.bf16 %v369, %v369
        %v645 = vpack.c.bf16 %v373, %v373
        %v646 = vpack.c.bf16 %v377, %v377
        %v647 = vpack.c.bf16 %v381, %v381
        %v648 = vpack.c.bf16 %v385, %v385
        %v649 = vpack.c.bf16 %v389, %v389
        %v650 = vpack.c.bf16 %v393, %v393
        %v651 = vpack.c.bf16 %v397, %v397
        %v652 = vpack.c.bf16 %v401, %v401
        %v653 = vpack.c.bf16 %v405, %v405
        %v654 = vpack.c.bf16 %v409, %v409
        %v655 = vpack.c.bf16 %v413, %v413
        %v656 = vpack.c.bf16 %v417, %v417
        %v657 = vpack.c.bf16 %v421, %v421
        %v658 = vpack.c.bf16 %v425, %v425
        %v659 = vpack.c.bf16 %v429, %v429
        %v660 = vpack.c.bf16 %v433, %v433
        %v661 = vpack.c.bf16 %v437, %v437
        %v662 = vpack.c.bf16 %v441, %v441
        %v663 = vpack.c.bf16 %v445, %v445
        %v664 = vpack.c.bf16 %v449, %v449
        %v665 = vpack.c.bf16 %v453, %v453
        %v666 = vpack.c.bf16 %v457, %v457
        %v667 = vpack.c.bf16 %v461, %v461
        %v668 = vpack.c.bf16 %v465, %v465
        %v669 = vpack.c.bf16 %v469, %v469
        %v670 = vpack.c.bf16 %v473, %v473
        %v671 = vpack.c.bf16 %v477, %v477
        %v672 = vpack.c.bf16 %v481, %v481
        %v673 = vpack.c.bf16 %v485, %v485
        %v674 = vpack.c.bf16 %v489, %v489
        %v675 = vpack.c.bf16 %v493, %v493
        %v676 = vpack.c.bf16 %v497, %v497
        %v677 = vpack.c.bf16 %v501, %v501
        %v678 = vpack.c.bf16 %v505, %v505
        %v679 = vpack.c.bf16 %v509, %v509
        %v680 = vpack.c.bf16 %v513, %v513
        %v681 = vpack.c.bf16 %v517, %v517
        %v682 = vpack.c.bf16 %v521, %v521
        %v683 = vpack.c.bf16 %v525, %v525
        %v684 = vpack.c.bf16 %v529, %v529
        %v685 = vpack.c.bf16 %v533, %v533
        %v686 = vpack.c.bf16 %v537, %v537
        %v687 = vpack.c.bf16 %v541, %v541
        %v688 = vpack.c.bf16 %v545, %v545
        %v689 = vpack.c.bf16 %v549, %v549
        %v690 = vpack.c.bf16 %v553, %v553
        %v691 = vpack.c.bf16 %v557, %v557
        %v692 = vpack.c.bf16 %v561, %v561
        %v693 = vpack.c.bf16 %v565, %v565
        %v694 = vld [vmem:[%s221] sm:$0xff]
        %v695 = vld [vmem:[%s221 + $0x8] sm:$0xff]
        %v696 = vld [vmem:[%s221 + $0x10] sm:$0xff]
        %v697 = vld [vmem:[%s221 + $0x18] sm:$0xff]
        %v698 = vld [vmem:[%s221 + $0x20] sm:$0xff]
        %v699 = vld [vmem:[%s221 + $0x28] sm:$0xff]
        %v700 = vld [vmem:[%s221 + $0x30] sm:$0xff]
        %v701 = vld [vmem:[%s221 + $0x38] sm:$0xff]
        %v702 = vld [vmem:[%s221 + $0x40] sm:$0xff]
        %v703 = vld [vmem:[%s221 + $0x48] sm:$0xff]
        %v704 = vld [vmem:[%s221 + $0x50] sm:$0xff]
        %v705 = vld [vmem:[%s221 + $0x58] sm:$0xff]
        %v706 = vld [vmem:[%s221 + $0x60] sm:$0xff]
        %v707 = vld [vmem:[%s221 + $0x68] sm:$0xff]
        %v708 = vld [vmem:[%s221 + $0x70] sm:$0xff]
        %v709 = vld [vmem:[%s221 + $0x78] sm:$0xff]
        %v710 = vld [vmem:[%s221 + $0x80] sm:$0xff]
        %v711 = vld [vmem:[%s221 + $0x88] sm:$0xff]
        %v712 = vld [vmem:[%s221 + $0x90] sm:$0xff]
        %v713 = vld [vmem:[%s221 + $0x98] sm:$0xff]
        %v714 = vld [vmem:[%s221 + $0xa0] sm:$0xff]
        %v715 = vld [vmem:[%s221 + $0xa8] sm:$0xff]
        %v716 = vld [vmem:[%s221 + $0xb0] sm:$0xff]
        %v717 = vld [vmem:[%s221 + $0xb8] sm:$0xff]
        %v718 = vld [vmem:[%s221 + $0xc0] sm:$0xff]
        %v719 = vld [vmem:[%s221 + $0xc8] sm:$0xff]
        %v720 = vld [vmem:[%s221 + $0xd0] sm:$0xff]
        %v721 = vld [vmem:[%s221 + $0xd8] sm:$0xff]
        %v722 = vld [vmem:[%s221 + $0xe0] sm:$0xff]
        %v723 = vld [vmem:[%s221 + $0xe8] sm:$0xff]
        %v724 = vld [vmem:[%s221 + $0xf0] sm:$0xff]
        %v725 = vld [vmem:[%s221 + $0xf8] sm:$0xff]
        %v726 = vld [vmem:[%s221 + $0x100] sm:$0xff]
        %v727 = vld [vmem:[%s221 + $0x108] sm:$0xff]
        %v728 = vld [vmem:[%s221 + $0x110] sm:$0xff]
        %v729 = vld [vmem:[%s221 + $0x118] sm:$0xff]
        %v730 = vld [vmem:[%s221 + $0x120] sm:$0xff]
        %v731 = vld [vmem:[%s221 + $0x128] sm:$0xff]
        %v732 = vld [vmem:[%s221 + $0x130] sm:$0xff]
        %v733 = vld [vmem:[%s221 + $0x138] sm:$0xff]
        %v734 = vld [vmem:[%s221 + $0x140] sm:$0xff]
        %v735 = vld [vmem:[%s221 + $0x148] sm:$0xff]
        %v736 = vld [vmem:[%s221 + $0x150] sm:$0xff]
        %v737 = vld [vmem:[%s221 + $0x158] sm:$0xff]
        %v738 = vld [vmem:[%s221 + $0x160] sm:$0xff]
        %v739 = vld [vmem:[%s221 + $0x168] sm:$0xff]
        %v740 = vld [vmem:[%s221 + $0x170] sm:$0xff]
        %v741 = vld [vmem:[%s221 + $0x178] sm:$0xff]
        %v742 = vld [vmem:[%s221 + $0x180] sm:$0xff]
        %v743 = vld [vmem:[%s221 + $0x188] sm:$0xff]
        %v744 = vld [vmem:[%s221 + $0x190] sm:$0xff]
        %v745 = vld [vmem:[%s221 + $0x198] sm:$0xff]
        %v746 = vld [vmem:[%s221 + $0x1a0] sm:$0xff]
        %v747 = vld [vmem:[%s221 + $0x1a8] sm:$0xff]
        %v748 = vld [vmem:[%s221 + $0x1b0] sm:$0xff]
        %v749 = vld [vmem:[%s221 + $0x1b8] sm:$0xff]
        %v750 = vld [vmem:[%s221 + $0x1c0] sm:$0xff]
        %v751 = vld [vmem:[%s221 + $0x1c8] sm:$0xff]
        %v752 = vld [vmem:[%s221 + $0x1d0] sm:$0xff]
        %v753 = vld [vmem:[%s221 + $0x1d8] sm:$0xff]
        %v754 = vld [vmem:[%s221 + $0x1e0] sm:$0xff]
        %v755 = vld [vmem:[%s221 + $0x1e8] sm:$0xff]
        %v756 = vld [vmem:[%s221 + $0x1f0] sm:$0xff]
        %v757 = vld [vmem:[%s221 + $0x1f8] sm:$0xff]
        %v758 = vld [vmem:[%s221 + $0x200] sm:$0xff]
        %v759 = vld [vmem:[%s221 + $0x208] sm:$0xff]
        %v760 = vld [vmem:[%s221 + $0x210] sm:$0xff]
        %v761 = vld [vmem:[%s221 + $0x218] sm:$0xff]
        %v762 = vld [vmem:[%s221 + $0x220] sm:$0xff]
        %v763 = vld [vmem:[%s221 + $0x228] sm:$0xff]
        %v764 = vld [vmem:[%s221 + $0x230] sm:$0xff]
        %v765 = vld [vmem:[%s221 + $0x238] sm:$0xff]
        %v766 = vld [vmem:[%s221 + $0x240] sm:$0xff]
        %v767 = vld [vmem:[%s221 + $0x248] sm:$0xff]
        %v768 = vld [vmem:[%s221 + $0x250] sm:$0xff]
        %v769 = vld [vmem:[%s221 + $0x258] sm:$0xff]
        %v770 = vld [vmem:[%s221 + $0x260] sm:$0xff]
        %v771 = vld [vmem:[%s221 + $0x268] sm:$0xff]
        %v772 = vld [vmem:[%s221 + $0x270] sm:$0xff]
        %v773 = vld [vmem:[%s221 + $0x278] sm:$0xff]
        %v774 = vld [vmem:[%s221 + $0x280] sm:$0xff]
        %v775 = vld [vmem:[%s221 + $0x288] sm:$0xff]
        %v776 = vld [vmem:[%s221 + $0x290] sm:$0xff]
        %v777 = vld [vmem:[%s221 + $0x298] sm:$0xff]
        %v778 = vld [vmem:[%s221 + $0x2a0] sm:$0xff]
        %v779 = vld [vmem:[%s221 + $0x2a8] sm:$0xff]
        %v780 = vld [vmem:[%s221 + $0x2b0] sm:$0xff]
        %v781 = vld [vmem:[%s221 + $0x2b8] sm:$0xff]
        %v782 = vld [vmem:[%s221 + $0x2c0] sm:$0xff]
        %v783 = vld [vmem:[%s221 + $0x2c8] sm:$0xff]
        %v784 = vld [vmem:[%s221 + $0x2d0] sm:$0xff]
        %v785 = vld [vmem:[%s221 + $0x2d8] sm:$0xff]
        %v786 = vld [vmem:[%s221 + $0x2e0] sm:$0xff]
        %v787 = vld [vmem:[%s221 + $0x2e8] sm:$0xff]
        %v788 = vld [vmem:[%s221 + $0x2f0] sm:$0xff]
        %v789 = vld [vmem:[%s221 + $0x2f8] sm:$0xff]
        %v790 = vld [vmem:[%s221 + $0x300] sm:$0xff]
        %v791 = vld [vmem:[%s221 + $0x308] sm:$0xff]
        %v792 = vld [vmem:[%s221 + $0x310] sm:$0xff]
        %v793 = vld [vmem:[%s221 + $0x318] sm:$0xff]
        %v794 = vld [vmem:[%s221 + $0x320] sm:$0xff]
        %v795 = vld [vmem:[%s221 + $0x328] sm:$0xff]
        %v796 = vld [vmem:[%s221 + $0x330] sm:$0xff]
        %v797 = vld [vmem:[%s221 + $0x338] sm:$0xff]
        %v798 = vld [vmem:[%s221 + $0x340] sm:$0xff]
        %v799 = vld [vmem:[%s221 + $0x348] sm:$0xff]
        %v800 = vld [vmem:[%s221 + $0x350] sm:$0xff]
        %v801 = vld [vmem:[%s221 + $0x358] sm:$0xff]
        %v802 = vld [vmem:[%s221 + $0x360] sm:$0xff]
        %v803 = vld [vmem:[%s221 + $0x368] sm:$0xff]
        %v804 = vld [vmem:[%s221 + $0x370] sm:$0xff]
        %v805 = vld [vmem:[%s221 + $0x378] sm:$0xff]
        %v806 = vld [vmem:[%s221 + $0x380] sm:$0xff]
        %v807 = vld [vmem:[%s221 + $0x388] sm:$0xff]
        %v808 = vld [vmem:[%s221 + $0x390] sm:$0xff]
        %v809 = vld [vmem:[%s221 + $0x398] sm:$0xff]
        %v810 = vld [vmem:[%s221 + $0x3a0] sm:$0xff]
        %v811 = vld [vmem:[%s221 + $0x3a8] sm:$0xff]
        %v812 = vld [vmem:[%s221 + $0x3b0] sm:$0xff]
        %v813 = vld [vmem:[%s221 + $0x3b8] sm:$0xff]
        %v814 = vld [vmem:[%s221 + $0x3c0] sm:$0xff]
        %v815 = vld [vmem:[%s221 + $0x3c8] sm:$0xff]
        %v816 = vld [vmem:[%s221 + $0x3d0] sm:$0xff]
        %v817 = vld [vmem:[%s221 + $0x3d8] sm:$0xff]
        %v818 = vld [vmem:[%s221 + $0x3e0] sm:$0xff]
        %v819 = vld [vmem:[%s221 + $0x3e8] sm:$0xff]
        %v820 = vld [vmem:[%s221 + $0x3f0] sm:$0xff]
        %v821 = vld [vmem:[%s221 + $0x3f8] sm:$0xff]
        %v822 = vld [vmem:[%s221 + $0x400] sm:$0xff]
        %v823 = vld [vmem:[%s221 + $0x408] sm:$0xff]
        %v824 = vld [vmem:[%s221 + $0x410] sm:$0xff]
        %v825 = vld [vmem:[%s221 + $0x418] sm:$0xff]
        %v826 = vld [vmem:[%s221 + $0x420] sm:$0xff]
        %v827 = vld [vmem:[%s221 + $0x428] sm:$0xff]
        %v828 = vld [vmem:[%s221 + $0x430] sm:$0xff]
        %v829 = vld [vmem:[%s221 + $0x438] sm:$0xff]
        %v830 = vld [vmem:[%s221 + $0x440] sm:$0xff]
        %v831 = vld [vmem:[%s221 + $0x448] sm:$0xff]
        %v832 = vld [vmem:[%s221 + $0x450] sm:$0xff]
        %v833 = vld [vmem:[%s221 + $0x458] sm:$0xff]
        %v834 = vld [vmem:[%s221 + $0x460] sm:$0xff]
        %v835 = vld [vmem:[%s221 + $0x468] sm:$0xff]
        %v836 = vld [vmem:[%s221 + $0x470] sm:$0xff]
        %v837 = vld [vmem:[%s221 + $0x478] sm:$0xff]
        %v838 = vld [vmem:[%s221 + $0x480] sm:$0xff]
        %v839 = vld [vmem:[%s221 + $0x488] sm:$0xff]
        %v840 = vld [vmem:[%s221 + $0x490] sm:$0xff]
        %v841 = vld [vmem:[%s221 + $0x498] sm:$0xff]
        %v842 = vld [vmem:[%s221 + $0x4a0] sm:$0xff]
        %v843 = vld [vmem:[%s221 + $0x4a8] sm:$0xff]
        %v844 = vld [vmem:[%s221 + $0x4b0] sm:$0xff]
        %v845 = vld [vmem:[%s221 + $0x4b8] sm:$0xff]
        %v846 = vld [vmem:[%s221 + $0x4c0] sm:$0xff]
        %v847 = vld [vmem:[%s221 + $0x4c8] sm:$0xff]
        %v848 = vld [vmem:[%s221 + $0x4d0] sm:$0xff]
        %v849 = vld [vmem:[%s221 + $0x4d8] sm:$0xff]
        %v850 = vld [vmem:[%s221 + $0x4e0] sm:$0xff]
        %v851 = vld [vmem:[%s221 + $0x4e8] sm:$0xff]
        %v852 = vld [vmem:[%s221 + $0x4f0] sm:$0xff]
        %v853 = vld [vmem:[%s221 + $0x4f8] sm:$0xff]
        %v854 = vld [vmem:[%s221 + $0x500] sm:$0xff]
        %v855 = vld [vmem:[%s221 + $0x508] sm:$0xff]
        %v856 = vld [vmem:[%s221 + $0x510] sm:$0xff]
        %v857 = vld [vmem:[%s221 + $0x518] sm:$0xff]
        %v858 = vld [vmem:[%s221 + $0x520] sm:$0xff]
        %v859 = vld [vmem:[%s221 + $0x528] sm:$0xff]
        %v860 = vld [vmem:[%s221 + $0x530] sm:$0xff]
        %v861 = vld [vmem:[%s221 + $0x538] sm:$0xff]
        %v862 = vld [vmem:[%s221 + $0x540] sm:$0xff]
        %v863 = vld [vmem:[%s221 + $0x548] sm:$0xff]
        %v864 = vld [vmem:[%s221 + $0x550] sm:$0xff]
        %v865 = vld [vmem:[%s221 + $0x558] sm:$0xff]
        %v866 = vld [vmem:[%s221 + $0x560] sm:$0xff]
        %v867 = vld [vmem:[%s221 + $0x568] sm:$0xff]
        %v868 = vld [vmem:[%s221 + $0x570] sm:$0xff]
        %v869 = vld [vmem:[%s221 + $0x578] sm:$0xff]
        %v870 = vld [vmem:[%s221 + $0x580] sm:$0xff]
        %v871 = vld [vmem:[%s221 + $0x588] sm:$0xff]
        %v872 = vld [vmem:[%s221 + $0x590] sm:$0xff]
        %v873 = vld [vmem:[%s221 + $0x598] sm:$0xff]
        %v874 = vld [vmem:[%s221 + $0x5a0] sm:$0xff]
        %v875 = vld [vmem:[%s221 + $0x5a8] sm:$0xff]
        %v876 = vld [vmem:[%s221 + $0x5b0] sm:$0xff]
        %v877 = vld [vmem:[%s221 + $0x5b8] sm:$0xff]
        %v878 = vld [vmem:[%s221 + $0x5c0] sm:$0xff]
        %v879 = vld [vmem:[%s221 + $0x5c8] sm:$0xff]
        %v880 = vld [vmem:[%s221 + $0x5d0] sm:$0xff]
        %v881 = vld [vmem:[%s221 + $0x5d8] sm:$0xff]
        %v882 = vld [vmem:[%s221 + $0x5e0] sm:$0xff]
        %v883 = vld [vmem:[%s221 + $0x5e8] sm:$0xff]
        %v884 = vld [vmem:[%s221 + $0x5f0] sm:$0xff]
        %v885 = vld [vmem:[%s221 + $0x5f8] sm:$0xff]
        %v886 = vld [vmem:[%s221 + $0x600] sm:$0xff]
        %v887 = vld [vmem:[%s221 + $0x608] sm:$0xff]
        %v888 = vld [vmem:[%s221 + $0x610] sm:$0xff]
        %v889 = vld [vmem:[%s221 + $0x618] sm:$0xff]
        %v890 = vld [vmem:[%s221 + $0x620] sm:$0xff]
        %v891 = vld [vmem:[%s221 + $0x628] sm:$0xff]
        %v892 = vld [vmem:[%s221 + $0x630] sm:$0xff]
        %v893 = vld [vmem:[%s221 + $0x638] sm:$0xff]
        %v894 = vld [vmem:[%s221 + $0x640] sm:$0xff]
        %v895 = vld [vmem:[%s221 + $0x648] sm:$0xff]
        %v896 = vld [vmem:[%s221 + $0x650] sm:$0xff]
        %v897 = vld [vmem:[%s221 + $0x658] sm:$0xff]
        %v898 = vld [vmem:[%s221 + $0x660] sm:$0xff]
        %v899 = vld [vmem:[%s221 + $0x668] sm:$0xff]
        %v900 = vld [vmem:[%s221 + $0x670] sm:$0xff]
        %v901 = vld [vmem:[%s221 + $0x678] sm:$0xff]
        %v902 = vld [vmem:[%s221 + $0x680] sm:$0xff]
        %v903 = vld [vmem:[%s221 + $0x688] sm:$0xff]
        %v904 = vld [vmem:[%s221 + $0x690] sm:$0xff]
        %v905 = vld [vmem:[%s221 + $0x698] sm:$0xff]
        %v906 = vld [vmem:[%s221 + $0x6a0] sm:$0xff]
        %v907 = vld [vmem:[%s221 + $0x6a8] sm:$0xff]
        %v908 = vld [vmem:[%s221 + $0x6b0] sm:$0xff]
        %v909 = vld [vmem:[%s221 + $0x6b8] sm:$0xff]
        %v910 = vld [vmem:[%s221 + $0x6c0] sm:$0xff]
        %v911 = vld [vmem:[%s221 + $0x6c8] sm:$0xff]
        %v912 = vld [vmem:[%s221 + $0x6d0] sm:$0xff]
        %v913 = vld [vmem:[%s221 + $0x6d8] sm:$0xff]
        %v914 = vld [vmem:[%s221 + $0x6e0] sm:$0xff]
        %v915 = vld [vmem:[%s221 + $0x6e8] sm:$0xff]
        %v916 = vld [vmem:[%s221 + $0x6f0] sm:$0xff]
        %v917 = vld [vmem:[%s221 + $0x6f8] sm:$0xff]
        %v918 = vld [vmem:[%s221 + $0x700] sm:$0xff]
        %v919 = vld [vmem:[%s221 + $0x708] sm:$0xff]
        %v920 = vld [vmem:[%s221 + $0x710] sm:$0xff]
        %v921 = vld [vmem:[%s221 + $0x718] sm:$0xff]
        %v922 = vld [vmem:[%s221 + $0x720] sm:$0xff]
        %v923 = vld [vmem:[%s221 + $0x728] sm:$0xff]
        %v924 = vld [vmem:[%s221 + $0x730] sm:$0xff]
        %v925 = vld [vmem:[%s221 + $0x738] sm:$0xff]
        %v926 = vld [vmem:[%s221 + $0x740] sm:$0xff]
        %v927 = vld [vmem:[%s221 + $0x748] sm:$0xff]
        %v928 = vld [vmem:[%s221 + $0x750] sm:$0xff]
        %v929 = vld [vmem:[%s221 + $0x758] sm:$0xff]
        %v930 = vld [vmem:[%s221 + $0x760] sm:$0xff]
        %v931 = vld [vmem:[%s221 + $0x768] sm:$0xff]
        %v932 = vld [vmem:[%s221 + $0x770] sm:$0xff]
        %v933 = vld [vmem:[%s221 + $0x778] sm:$0xff]
        %v934 = vld [vmem:[%s221 + $0x780] sm:$0xff]
        %v935 = vld [vmem:[%s221 + $0x788] sm:$0xff]
        %v936 = vld [vmem:[%s221 + $0x790] sm:$0xff]
        %v937 = vld [vmem:[%s221 + $0x798] sm:$0xff]
        %v938 = vld [vmem:[%s221 + $0x7a0] sm:$0xff]
        %v939 = vld [vmem:[%s221 + $0x7a8] sm:$0xff]
        %v940 = vld [vmem:[%s221 + $0x7b0] sm:$0xff]
        %v941 = vld [vmem:[%s221 + $0x7b8] sm:$0xff]
        %v942 = vld [vmem:[%s221 + $0x7c0] sm:$0xff]
        %v943 = vld [vmem:[%s221 + $0x7c8] sm:$0xff]
        %v944 = vld [vmem:[%s221 + $0x7d0] sm:$0xff]
        %v945 = vld [vmem:[%s221 + $0x7d8] sm:$0xff]
        %v946 = vld [vmem:[%s221 + $0x7e0] sm:$0xff]
        %v947 = vld [vmem:[%s221 + $0x7e8] sm:$0xff]
        %v948 = vld [vmem:[%s221 + $0x7f0] sm:$0xff]
        %v949 = vld [vmem:[%s221 + $0x7f8] sm:$0xff]
        %v950 = vld [vmem:[%s230] sm:$0xf]
        %v952 = vlaneseq
        %v953 = vshrl.u32 %v952, 7
        %v954 = vsub.s32 0, %v953
        %v955 = vrot.slane %v950, %v954
        %v956 = vlaneseq
        %v957 = vshrl.u32 %v956, 7
        %v958 = vsub.s32 1, %v957
        %v959 = vrot.slane %v950, %v958
        %v960 = vlaneseq
        %v961 = vshrl.u32 %v960, 7
        %v962 = vsub.s32 2, %v961
        %v963 = vrot.slane %v950, %v962
        %v964 = vlaneseq
        %v965 = vshrl.u32 %v964, 7
        %v966 = vsub.s32 3, %v965
        %v967 = vrot.slane %v950, %v966
        %v1036 = vunpack.c.l.b16 %v630
        %v1037 = vunpack.c.l.b16 %v631
        %v1038 = vunpack.c.l.b16 %v632
        %v1039 = vunpack.c.l.b16 %v633
        %v1040 = vunpack.c.l.b16 %v634
        %v1041 = vunpack.c.l.b16 %v635
        %v1042 = vunpack.c.l.b16 %v636
        %v1043 = vunpack.c.l.b16 %v637
        %v1044 = vunpack.c.l.b16 %v638
        %v1045 = vunpack.c.l.b16 %v639
        %v1046 = vunpack.c.l.b16 %v640
        %v1047 = vunpack.c.l.b16 %v641
        %v1048 = vunpack.c.l.b16 %v642
        %v1049 = vunpack.c.l.b16 %v643
        %v1050 = vunpack.c.l.b16 %v644
        %v1051 = vunpack.c.l.b16 %v645
        %v1052 = vunpack.c.l.b16 %v646
        %v1053 = vunpack.c.l.b16 %v647
        %v1054 = vunpack.c.l.b16 %v648
        %v1055 = vunpack.c.l.b16 %v649
        %v1056 = vunpack.c.l.b16 %v650
        %v1057 = vunpack.c.l.b16 %v651
        %v1058 = vunpack.c.l.b16 %v652
        %v1059 = vunpack.c.l.b16 %v653
        %v1060 = vunpack.c.l.b16 %v654
        %v1061 = vunpack.c.l.b16 %v655
        %v1062 = vunpack.c.l.b16 %v656
        %v1063 = vunpack.c.l.b16 %v657
        %v1064 = vunpack.c.l.b16 %v658
        %v1065 = vunpack.c.l.b16 %v659
        %v1066 = vunpack.c.l.b16 %v660
        %v1067 = vunpack.c.l.b16 %v661
        %v1068 = vunpack.c.l.b16 %v662
        %v1069 = vunpack.c.l.b16 %v663
        %v1070 = vunpack.c.l.b16 %v664
        %v1071 = vunpack.c.l.b16 %v665
        %v1072 = vunpack.c.l.b16 %v666
        %v1073 = vunpack.c.l.b16 %v667
        %v1074 = vunpack.c.l.b16 %v668
        %v1075 = vunpack.c.l.b16 %v669
        %v1076 = vunpack.c.l.b16 %v670
        %v1077 = vunpack.c.l.b16 %v671
        %v1078 = vunpack.c.l.b16 %v672
        %v1079 = vunpack.c.l.b16 %v673
        %v1080 = vunpack.c.l.b16 %v674
        %v1081 = vunpack.c.l.b16 %v675
        %v1082 = vunpack.c.l.b16 %v676
        %v1083 = vunpack.c.l.b16 %v677
        %v1084 = vunpack.c.l.b16 %v678
        %v1085 = vunpack.c.l.b16 %v679
        %v1086 = vunpack.c.l.b16 %v680
        %v1087 = vunpack.c.l.b16 %v681
        %v1088 = vunpack.c.l.b16 %v682
        %v1089 = vunpack.c.l.b16 %v683
        %v1090 = vunpack.c.l.b16 %v684
        %v1091 = vunpack.c.l.b16 %v685
        %v1092 = vunpack.c.l.b16 %v686
        %v1093 = vunpack.c.l.b16 %v687
        %v1094 = vunpack.c.l.b16 %v688
        %v1095 = vunpack.c.l.b16 %v689
        %v1096 = vunpack.c.l.b16 %v690
        %v1097 = vunpack.c.l.b16 %v691
        %v1098 = vunpack.c.l.b16 %v692
        %v1099 = vunpack.c.l.b16 %v693
        %v1100 = vrot.slane %v1044, 7
        %vm1101 = vcmask 1041409
        %v1102 = vsel %vm1101, %v1100, %v1036
        %v1103 = vrot.slane %v1052, 6
        %vm1104 = vcmask 1042434
        %v1105 = vsel %vm1104, %v1103, %v1102
        %v1106 = vrot.slane %v1060, 5
        %vm1107 = vcmask 1043459
        %v1108 = vsel %vm1107, %v1106, %v1105
        %v1109 = vrot.slane %v1068, 4
        %vm1110 = vcmask 1044484
        %v1111 = vsel %vm1110, %v1109, %v1108
        %v1112 = vrot.slane %v1076, 3
        %vm1113 = vcmask 1045509
        %v1114 = vsel %vm1113, %v1112, %v1111
        %v1115 = vrot.slane %v1084, 2
        %vm1116 = vcmask 1046534
        %v1117 = vsel %vm1116, %v1115, %v1114
        %v1118 = vrot.slane %v1092, 1
        %vm1119 = vcmask 1047559
        %v1120 = vsel %vm1119, %v1118, %v1117
        %v1121 = vrot.slane %v1045, 7
        %v1122 = vsel %vm1101, %v1121, %v1037
        %v1123 = vrot.slane %v1053, 6
        %v1124 = vsel %vm1104, %v1123, %v1122
        %v1125 = vrot.slane %v1061, 5
        %v1126 = vsel %vm1107, %v1125, %v1124
        %v1127 = vrot.slane %v1069, 4
        %v1128 = vsel %vm1110, %v1127, %v1126
        %v1129 = vrot.slane %v1077, 3
        %v1130 = vsel %vm1113, %v1129, %v1128
        %v1131 = vrot.slane %v1085, 2
        %v1132 = vsel %vm1116, %v1131, %v1130
        %v1133 = vrot.slane %v1093, 1
        %v1134 = vsel %vm1119, %v1133, %v1132
        %v1135 = vrot.slane %v1046, 7
        %v1136 = vsel %vm1101, %v1135, %v1038
        %v1137 = vrot.slane %v1054, 6
        %v1138 = vsel %vm1104, %v1137, %v1136
        %v1139 = vrot.slane %v1062, 5
        %v1140 = vsel %vm1107, %v1139, %v1138
        %v1141 = vrot.slane %v1070, 4
        %v1142 = vsel %vm1110, %v1141, %v1140
        %v1143 = vrot.slane %v1078, 3
        %v1144 = vsel %vm1113, %v1143, %v1142
        %v1145 = vrot.slane %v1086, 2
        %v1146 = vsel %vm1116, %v1145, %v1144
        %v1147 = vrot.slane %v1094, 1
        %v1148 = vsel %vm1119, %v1147, %v1146
        %v1149 = vrot.slane %v1047, 7
        %v1150 = vsel %vm1101, %v1149, %v1039
        %v1151 = vrot.slane %v1055, 6
        %v1152 = vsel %vm1104, %v1151, %v1150
        %v1153 = vrot.slane %v1063, 5
        %v1154 = vsel %vm1107, %v1153, %v1152
        %v1155 = vrot.slane %v1071, 4
        %v1156 = vsel %vm1110, %v1155, %v1154
        %v1157 = vrot.slane %v1079, 3
        %v1158 = vsel %vm1113, %v1157, %v1156
        %v1159 = vrot.slane %v1087, 2
        %v1160 = vsel %vm1116, %v1159, %v1158
        %v1161 = vrot.slane %v1095, 1
        %v1162 = vsel %vm1119, %v1161, %v1160
        %v1163 = vrot.slane %v1048, 7
        %v1164 = vsel %vm1101, %v1163, %v1040
        %v1165 = vrot.slane %v1056, 6
        %v1166 = vsel %vm1104, %v1165, %v1164
        %v1167 = vrot.slane %v1064, 5
        %v1168 = vsel %vm1107, %v1167, %v1166
        %v1169 = vrot.slane %v1072, 4
        %v1170 = vsel %vm1110, %v1169, %v1168
        %v1171 = vrot.slane %v1080, 3
        %v1172 = vsel %vm1113, %v1171, %v1170
        %v1173 = vrot.slane %v1088, 2
        %v1174 = vsel %vm1116, %v1173, %v1172
        %v1175 = vrot.slane %v1096, 1
        %v1176 = vsel %vm1119, %v1175, %v1174
        %v1177 = vrot.slane %v1049, 7
        %v1178 = vsel %vm1101, %v1177, %v1041
        %v1179 = vrot.slane %v1057, 6
        %v1180 = vsel %vm1104, %v1179, %v1178
        %v1181 = vrot.slane %v1065, 5
        %v1182 = vsel %vm1107, %v1181, %v1180
        %v1183 = vrot.slane %v1073, 4
        %v1184 = vsel %vm1110, %v1183, %v1182
        %v1185 = vrot.slane %v1081, 3
        %v1186 = vsel %vm1113, %v1185, %v1184
        %v1187 = vrot.slane %v1089, 2
        %v1188 = vsel %vm1116, %v1187, %v1186
        %v1189 = vrot.slane %v1097, 1
        %v1190 = vsel %vm1119, %v1189, %v1188
        %v1191 = vrot.slane %v1050, 7
        %v1192 = vsel %vm1101, %v1191, %v1042
        %v1193 = vrot.slane %v1058, 6
        %v1194 = vsel %vm1104, %v1193, %v1192
        %v1195 = vrot.slane %v1066, 5
        %v1196 = vsel %vm1107, %v1195, %v1194
        %v1197 = vrot.slane %v1074, 4
        %v1198 = vsel %vm1110, %v1197, %v1196
        %v1199 = vrot.slane %v1082, 3
        %v1200 = vsel %vm1113, %v1199, %v1198
        %v1201 = vrot.slane %v1090, 2
        %v1202 = vsel %vm1116, %v1201, %v1200
        %v1203 = vrot.slane %v1098, 1
        %v1204 = vsel %vm1119, %v1203, %v1202
        %v1205 = vrot.slane %v1051, 7
        %v1206 = vsel %vm1101, %v1205, %v1043
        %v1207 = vrot.slane %v1059, 6
        %v1208 = vsel %vm1104, %v1207, %v1206
        %v1209 = vrot.slane %v1067, 5
        %v1210 = vsel %vm1107, %v1209, %v1208
        %v1211 = vrot.slane %v1075, 4
        %v1212 = vsel %vm1110, %v1211, %v1210
        %v1213 = vrot.slane %v1083, 3
        %v1214 = vsel %vm1113, %v1213, %v1212
        %v1215 = vrot.slane %v1091, 2
        %v1216 = vsel %vm1116, %v1215, %v1214
        %v1217 = vrot.slane %v1099, 1
        %v1218 = vsel %vm1119, %v1217, %v1216
        %v1219 = vpack.c.b16 %v1120, %v1120
        %v1220 = vpack.c.b16 %v1134, %v1134
        %v1221 = vpack.c.b16 %v1148, %v1148
        %v1222 = vpack.c.b16 %v1162, %v1162
        %v1223 = vpack.c.b16 %v1176, %v1176
        %v1224 = vpack.c.b16 %v1190, %v1190
        %v1225 = vpack.c.b16 %v1204, %v1204
        %v1226 = vpack.c.b16 %v1218, %v1218
        %v1491 = vunpack.c.l.b16 %v694
        %v1492 = vunpack.c.h.b16 %v694
        %v1493 = vunpack.c.l.b16 %v695
        %v1494 = vunpack.c.h.b16 %v695
        %v1495 = vunpack.c.l.b16 %v696
        %v1496 = vunpack.c.h.b16 %v696
        %v1497 = vunpack.c.l.b16 %v697
        %v1498 = vunpack.c.h.b16 %v697
        %v1499 = vunpack.c.l.b16 %v698
        %v1500 = vunpack.c.h.b16 %v698
        %v1501 = vunpack.c.l.b16 %v699
        %v1502 = vunpack.c.h.b16 %v699
        %v1503 = vunpack.c.l.b16 %v700
        %v1504 = vunpack.c.h.b16 %v700
        %v1505 = vunpack.c.l.b16 %v701
        %v1506 = vunpack.c.h.b16 %v701
        %v1507 = vunpack.c.l.b16 %v702
        %v1508 = vunpack.c.h.b16 %v702
        %v1509 = vunpack.c.l.b16 %v703
        %v1510 = vunpack.c.h.b16 %v703
        %v1511 = vunpack.c.l.b16 %v704
        %v1512 = vunpack.c.h.b16 %v704
        %v1513 = vunpack.c.l.b16 %v705
        %v1514 = vunpack.c.h.b16 %v705
        %v1515 = vunpack.c.l.b16 %v706
        %v1516 = vunpack.c.h.b16 %v706
        %v1517 = vunpack.c.l.b16 %v707
        %v1518 = vunpack.c.h.b16 %v707
        %v1519 = vunpack.c.l.b16 %v708
        %v1520 = vunpack.c.h.b16 %v708
        %v1521 = vunpack.c.l.b16 %v709
        %v1522 = vunpack.c.h.b16 %v709
        %v1523 = vunpack.c.l.b16 %v710
        %v1524 = vunpack.c.h.b16 %v710
        %v1525 = vunpack.c.l.b16 %v711
        %v1526 = vunpack.c.h.b16 %v711
        %v1527 = vunpack.c.l.b16 %v712
        %v1528 = vunpack.c.h.b16 %v712
        %v1529 = vunpack.c.l.b16 %v713
        %v1530 = vunpack.c.h.b16 %v713
        %v1531 = vunpack.c.l.b16 %v714
        %v1532 = vunpack.c.h.b16 %v714
        %v1533 = vunpack.c.l.b16 %v715
        %v1534 = vunpack.c.h.b16 %v715
        %v1535 = vunpack.c.l.b16 %v716
        %v1536 = vunpack.c.h.b16 %v716
        %v1537 = vunpack.c.l.b16 %v717
        %v1538 = vunpack.c.h.b16 %v717
        %v1539 = vunpack.c.l.b16 %v718
        %v1540 = vunpack.c.h.b16 %v718
        %v1541 = vunpack.c.l.b16 %v719
        %v1542 = vunpack.c.h.b16 %v719
        %v1543 = vunpack.c.l.b16 %v720
        %v1544 = vunpack.c.h.b16 %v720
        %v1545 = vunpack.c.l.b16 %v721
        %v1546 = vunpack.c.h.b16 %v721
        %v1547 = vunpack.c.l.b16 %v722
        %v1548 = vunpack.c.h.b16 %v722
        %v1549 = vunpack.c.l.b16 %v723
        %v1550 = vunpack.c.h.b16 %v723
        %v1551 = vunpack.c.l.b16 %v724
        %v1552 = vunpack.c.h.b16 %v724
        %v1553 = vunpack.c.l.b16 %v725
        %v1554 = vunpack.c.h.b16 %v725
        %v1555 = vunpack.c.l.b16 %v726
        %v1556 = vunpack.c.h.b16 %v726
        %v1557 = vunpack.c.l.b16 %v727
        %v1558 = vunpack.c.h.b16 %v727
        %v1559 = vunpack.c.l.b16 %v728
        %v1560 = vunpack.c.h.b16 %v728
        %v1561 = vunpack.c.l.b16 %v729
        %v1562 = vunpack.c.h.b16 %v729
        %v1563 = vunpack.c.l.b16 %v730
        %v1564 = vunpack.c.h.b16 %v730
        %v1565 = vunpack.c.l.b16 %v731
        %v1566 = vunpack.c.h.b16 %v731
        %v1567 = vunpack.c.l.b16 %v732
        %v1568 = vunpack.c.h.b16 %v732
        %v1569 = vunpack.c.l.b16 %v733
        %v1570 = vunpack.c.h.b16 %v733
        %v1571 = vunpack.c.l.b16 %v734
        %v1572 = vunpack.c.h.b16 %v734
        %v1573 = vunpack.c.l.b16 %v735
        %v1574 = vunpack.c.h.b16 %v735
        %v1575 = vunpack.c.l.b16 %v736
        %v1576 = vunpack.c.h.b16 %v736
        %v1577 = vunpack.c.l.b16 %v737
        %v1578 = vunpack.c.h.b16 %v737
        %v1579 = vunpack.c.l.b16 %v738
        %v1580 = vunpack.c.h.b16 %v738
        %v1581 = vunpack.c.l.b16 %v739
        %v1582 = vunpack.c.h.b16 %v739
        %v1583 = vunpack.c.l.b16 %v740
        %v1584 = vunpack.c.h.b16 %v740
        %v1585 = vunpack.c.l.b16 %v741
        %v1586 = vunpack.c.h.b16 %v741
        %v1587 = vunpack.c.l.b16 %v742
        %v1588 = vunpack.c.h.b16 %v742
        %v1589 = vunpack.c.l.b16 %v743
        %v1590 = vunpack.c.h.b16 %v743
        %v1591 = vunpack.c.l.b16 %v744
        %v1592 = vunpack.c.h.b16 %v744
        %v1593 = vunpack.c.l.b16 %v745
        %v1594 = vunpack.c.h.b16 %v745
        %v1595 = vunpack.c.l.b16 %v746
        %v1596 = vunpack.c.h.b16 %v746
        %v1597 = vunpack.c.l.b16 %v747
        %v1598 = vunpack.c.h.b16 %v747
        %v1599 = vunpack.c.l.b16 %v748
        %v1600 = vunpack.c.h.b16 %v748
        %v1601 = vunpack.c.l.b16 %v749
        %v1602 = vunpack.c.h.b16 %v749
        %v1603 = vunpack.c.l.b16 %v750
        %v1604 = vunpack.c.h.b16 %v750
        %v1605 = vunpack.c.l.b16 %v751
        %v1606 = vunpack.c.h.b16 %v751
        %v1607 = vunpack.c.l.b16 %v752
        %v1608 = vunpack.c.h.b16 %v752
        %v1609 = vunpack.c.l.b16 %v753
        %v1610 = vunpack.c.h.b16 %v753
        %v1611 = vunpack.c.l.b16 %v754
        %v1612 = vunpack.c.h.b16 %v754
        %v1613 = vunpack.c.l.b16 %v755
        %v1614 = vunpack.c.h.b16 %v755
        %v1615 = vunpack.c.l.b16 %v756
        %v1616 = vunpack.c.h.b16 %v756
        %v1617 = vunpack.c.l.b16 %v757
        %v1618 = vunpack.c.h.b16 %v757
        %v1619 = vunpack.c.l.b16 %v758
        %v1620 = vunpack.c.h.b16 %v758
        %v1621 = vunpack.c.l.b16 %v759
        %v1622 = vunpack.c.h.b16 %v759
        %v1623 = vunpack.c.l.b16 %v760
        %v1624 = vunpack.c.h.b16 %v760
        %v1625 = vunpack.c.l.b16 %v761
        %v1626 = vunpack.c.h.b16 %v761
        %v1627 = vunpack.c.l.b16 %v762
        %v1628 = vunpack.c.h.b16 %v762
        %v1629 = vunpack.c.l.b16 %v763
        %v1630 = vunpack.c.h.b16 %v763
        %v1631 = vunpack.c.l.b16 %v764
        %v1632 = vunpack.c.h.b16 %v764
        %v1633 = vunpack.c.l.b16 %v765
        %v1634 = vunpack.c.h.b16 %v765
        %v1635 = vunpack.c.l.b16 %v766
        %v1636 = vunpack.c.h.b16 %v766
        %v1637 = vunpack.c.l.b16 %v767
        %v1638 = vunpack.c.h.b16 %v767
        %v1639 = vunpack.c.l.b16 %v768
        %v1640 = vunpack.c.h.b16 %v768
        %v1641 = vunpack.c.l.b16 %v769
        %v1642 = vunpack.c.h.b16 %v769
        %v1643 = vunpack.c.l.b16 %v770
        %v1644 = vunpack.c.h.b16 %v770
        %v1645 = vunpack.c.l.b16 %v771
        %v1646 = vunpack.c.h.b16 %v771
        %v1647 = vunpack.c.l.b16 %v772
        %v1648 = vunpack.c.h.b16 %v772
        %v1649 = vunpack.c.l.b16 %v773
        %v1650 = vunpack.c.h.b16 %v773
        %v1651 = vunpack.c.l.b16 %v774
        %v1652 = vunpack.c.h.b16 %v774
        %v1653 = vunpack.c.l.b16 %v775
        %v1654 = vunpack.c.h.b16 %v775
        %v1655 = vunpack.c.l.b16 %v776
        %v1656 = vunpack.c.h.b16 %v776
        %v1657 = vunpack.c.l.b16 %v777
        %v1658 = vunpack.c.h.b16 %v777
        %v1659 = vunpack.c.l.b16 %v778
        %v1660 = vunpack.c.h.b16 %v778
        %v1661 = vunpack.c.l.b16 %v779
        %v1662 = vunpack.c.h.b16 %v779
        %v1663 = vunpack.c.l.b16 %v780
        %v1664 = vunpack.c.h.b16 %v780
        %v1665 = vunpack.c.l.b16 %v781
        %v1666 = vunpack.c.h.b16 %v781
        %v1667 = vunpack.c.l.b16 %v782
        %v1668 = vunpack.c.h.b16 %v782
        %v1669 = vunpack.c.l.b16 %v783
        %v1670 = vunpack.c.h.b16 %v783
        %v1671 = vunpack.c.l.b16 %v784
        %v1672 = vunpack.c.h.b16 %v784
        %v1673 = vunpack.c.l.b16 %v785
        %v1674 = vunpack.c.h.b16 %v785
        %v1675 = vunpack.c.l.b16 %v786
        %v1676 = vunpack.c.h.b16 %v786
        %v1677 = vunpack.c.l.b16 %v787
        %v1678 = vunpack.c.h.b16 %v787
        %v1679 = vunpack.c.l.b16 %v788
        %v1680 = vunpack.c.h.b16 %v788
        %v1681 = vunpack.c.l.b16 %v789
        %v1682 = vunpack.c.h.b16 %v789
        %v1683 = vunpack.c.l.b16 %v790
        %v1684 = vunpack.c.h.b16 %v790
        %v1685 = vunpack.c.l.b16 %v791
        %v1686 = vunpack.c.h.b16 %v791
        %v1687 = vunpack.c.l.b16 %v792
        %v1688 = vunpack.c.h.b16 %v792
        %v1689 = vunpack.c.l.b16 %v793
        %v1690 = vunpack.c.h.b16 %v793
        %v1691 = vunpack.c.l.b16 %v794
        %v1692 = vunpack.c.h.b16 %v794
        %v1693 = vunpack.c.l.b16 %v795
        %v1694 = vunpack.c.h.b16 %v795
        %v1695 = vunpack.c.l.b16 %v796
        %v1696 = vunpack.c.h.b16 %v796
        %v1697 = vunpack.c.l.b16 %v797
        %v1698 = vunpack.c.h.b16 %v797
        %v1699 = vunpack.c.l.b16 %v798
        %v1700 = vunpack.c.h.b16 %v798
        %v1701 = vunpack.c.l.b16 %v799
        %v1702 = vunpack.c.h.b16 %v799
        %v1703 = vunpack.c.l.b16 %v800
        %v1704 = vunpack.c.h.b16 %v800
        %v1705 = vunpack.c.l.b16 %v801
        %v1706 = vunpack.c.h.b16 %v801
        %v1707 = vunpack.c.l.b16 %v802
        %v1708 = vunpack.c.h.b16 %v802
        %v1709 = vunpack.c.l.b16 %v803
        %v1710 = vunpack.c.h.b16 %v803
        %v1711 = vunpack.c.l.b16 %v804
        %v1712 = vunpack.c.h.b16 %v804
        %v1713 = vunpack.c.l.b16 %v805
        %v1714 = vunpack.c.h.b16 %v805
        %v1715 = vunpack.c.l.b16 %v806
        %v1716 = vunpack.c.h.b16 %v806
        %v1717 = vunpack.c.l.b16 %v807
        %v1718 = vunpack.c.h.b16 %v807
        %v1719 = vunpack.c.l.b16 %v808
        %v1720 = vunpack.c.h.b16 %v808
        %v1721 = vunpack.c.l.b16 %v809
        %v1722 = vunpack.c.h.b16 %v809
        %v1723 = vunpack.c.l.b16 %v810
        %v1724 = vunpack.c.h.b16 %v810
        %v1725 = vunpack.c.l.b16 %v811
        %v1726 = vunpack.c.h.b16 %v811
        %v1727 = vunpack.c.l.b16 %v812
        %v1728 = vunpack.c.h.b16 %v812
        %v1729 = vunpack.c.l.b16 %v813
        %v1730 = vunpack.c.h.b16 %v813
        %v1731 = vunpack.c.l.b16 %v814
        %v1732 = vunpack.c.h.b16 %v814
        %v1733 = vunpack.c.l.b16 %v815
        %v1734 = vunpack.c.h.b16 %v815
        %v1735 = vunpack.c.l.b16 %v816
        %v1736 = vunpack.c.h.b16 %v816
        %v1737 = vunpack.c.l.b16 %v817
        %v1738 = vunpack.c.h.b16 %v817
        %v1739 = vunpack.c.l.b16 %v818
        %v1740 = vunpack.c.h.b16 %v818
        %v1741 = vunpack.c.l.b16 %v819
        %v1742 = vunpack.c.h.b16 %v819
        %v1743 = vunpack.c.l.b16 %v820
        %v1744 = vunpack.c.h.b16 %v820
        %v1745 = vunpack.c.l.b16 %v821
        %v1746 = vunpack.c.h.b16 %v821
        %v1747 = vunpack.c.l.b16 %v822
        %v1748 = vunpack.c.h.b16 %v822
        %v1749 = vunpack.c.l.b16 %v823
        %v1750 = vunpack.c.h.b16 %v823
        %v1751 = vunpack.c.l.b16 %v824
        %v1752 = vunpack.c.h.b16 %v824
        %v1753 = vunpack.c.l.b16 %v825
        %v1754 = vunpack.c.h.b16 %v825
        %v1755 = vunpack.c.l.b16 %v826
        %v1756 = vunpack.c.h.b16 %v826
        %v1757 = vunpack.c.l.b16 %v827
        %v1758 = vunpack.c.h.b16 %v827
        %v1759 = vunpack.c.l.b16 %v828
        %v1760 = vunpack.c.h.b16 %v828
        %v1761 = vunpack.c.l.b16 %v829
        %v1762 = vunpack.c.h.b16 %v829
        %v1763 = vunpack.c.l.b16 %v830
        %v1764 = vunpack.c.h.b16 %v830
        %v1765 = vunpack.c.l.b16 %v831
        %v1766 = vunpack.c.h.b16 %v831
        %v1767 = vunpack.c.l.b16 %v832
        %v1768 = vunpack.c.h.b16 %v832
        %v1769 = vunpack.c.l.b16 %v833
        %v1770 = vunpack.c.h.b16 %v833
        %v1771 = vunpack.c.l.b16 %v834
        %v1772 = vunpack.c.h.b16 %v834
        %v1773 = vunpack.c.l.b16 %v835
        %v1774 = vunpack.c.h.b16 %v835
        %v1775 = vunpack.c.l.b16 %v836
        %v1776 = vunpack.c.h.b16 %v836
        %v1777 = vunpack.c.l.b16 %v837
        %v1778 = vunpack.c.h.b16 %v837
        %v1779 = vunpack.c.l.b16 %v838
        %v1780 = vunpack.c.h.b16 %v838
        %v1781 = vunpack.c.l.b16 %v839
        %v1782 = vunpack.c.h.b16 %v839
        %v1783 = vunpack.c.l.b16 %v840
        %v1784 = vunpack.c.h.b16 %v840
        %v1785 = vunpack.c.l.b16 %v841
        %v1786 = vunpack.c.h.b16 %v841
        %v1787 = vunpack.c.l.b16 %v842
        %v1788 = vunpack.c.h.b16 %v842
        %v1789 = vunpack.c.l.b16 %v843
        %v1790 = vunpack.c.h.b16 %v843
        %v1791 = vunpack.c.l.b16 %v844
        %v1792 = vunpack.c.h.b16 %v844
        %v1793 = vunpack.c.l.b16 %v845
        %v1794 = vunpack.c.h.b16 %v845
        %v1795 = vunpack.c.l.b16 %v846
        %v1796 = vunpack.c.h.b16 %v846
        %v1797 = vunpack.c.l.b16 %v847
        %v1798 = vunpack.c.h.b16 %v847
        %v1799 = vunpack.c.l.b16 %v848
        %v1800 = vunpack.c.h.b16 %v848
        %v1801 = vunpack.c.l.b16 %v849
        %v1802 = vunpack.c.h.b16 %v849
        %v1803 = vunpack.c.l.b16 %v850
        %v1804 = vunpack.c.h.b16 %v850
        %v1805 = vunpack.c.l.b16 %v851
        %v1806 = vunpack.c.h.b16 %v851
        %v1807 = vunpack.c.l.b16 %v852
        %v1808 = vunpack.c.h.b16 %v852
        %v1809 = vunpack.c.l.b16 %v853
        %v1810 = vunpack.c.h.b16 %v853
        %v1811 = vunpack.c.l.b16 %v854
        %v1812 = vunpack.c.h.b16 %v854
        %v1813 = vunpack.c.l.b16 %v855
        %v1814 = vunpack.c.h.b16 %v855
        %v1815 = vunpack.c.l.b16 %v856
        %v1816 = vunpack.c.h.b16 %v856
        %v1817 = vunpack.c.l.b16 %v857
        %v1818 = vunpack.c.h.b16 %v857
        %v1819 = vunpack.c.l.b16 %v858
        %v1820 = vunpack.c.h.b16 %v858
        %v1821 = vunpack.c.l.b16 %v859
        %v1822 = vunpack.c.h.b16 %v859
        %v1823 = vunpack.c.l.b16 %v860
        %v1824 = vunpack.c.h.b16 %v860
        %v1825 = vunpack.c.l.b16 %v861
        %v1826 = vunpack.c.h.b16 %v861
        %v1827 = vunpack.c.l.b16 %v862
        %v1828 = vunpack.c.h.b16 %v862
        %v1829 = vunpack.c.l.b16 %v863
        %v1830 = vunpack.c.h.b16 %v863
        %v1831 = vunpack.c.l.b16 %v864
        %v1832 = vunpack.c.h.b16 %v864
        %v1833 = vunpack.c.l.b16 %v865
        %v1834 = vunpack.c.h.b16 %v865
        %v1835 = vunpack.c.l.b16 %v866
        %v1836 = vunpack.c.h.b16 %v866
        %v1837 = vunpack.c.l.b16 %v867
        %v1838 = vunpack.c.h.b16 %v867
        %v1839 = vunpack.c.l.b16 %v868
        %v1840 = vunpack.c.h.b16 %v868
        %v1841 = vunpack.c.l.b16 %v869
        %v1842 = vunpack.c.h.b16 %v869
        %v1843 = vunpack.c.l.b16 %v870
        %v1844 = vunpack.c.h.b16 %v870
        %v1845 = vunpack.c.l.b16 %v871
        %v1846 = vunpack.c.h.b16 %v871
        %v1847 = vunpack.c.l.b16 %v872
        %v1848 = vunpack.c.h.b16 %v872
        %v1849 = vunpack.c.l.b16 %v873
        %v1850 = vunpack.c.h.b16 %v873
        %v1851 = vunpack.c.l.b16 %v874
        %v1852 = vunpack.c.h.b16 %v874
        %v1853 = vunpack.c.l.b16 %v875
        %v1854 = vunpack.c.h.b16 %v875
        %v1855 = vunpack.c.l.b16 %v876
        %v1856 = vunpack.c.h.b16 %v876
        %v1857 = vunpack.c.l.b16 %v877
        %v1858 = vunpack.c.h.b16 %v877
        %v1859 = vunpack.c.l.b16 %v878
        %v1860 = vunpack.c.h.b16 %v878
        %v1861 = vunpack.c.l.b16 %v879
        %v1862 = vunpack.c.h.b16 %v879
        %v1863 = vunpack.c.l.b16 %v880
        %v1864 = vunpack.c.h.b16 %v880
        %v1865 = vunpack.c.l.b16 %v881
        %v1866 = vunpack.c.h.b16 %v881
        %v1867 = vunpack.c.l.b16 %v882
        %v1868 = vunpack.c.h.b16 %v882
        %v1869 = vunpack.c.l.b16 %v883
        %v1870 = vunpack.c.h.b16 %v883
        %v1871 = vunpack.c.l.b16 %v884
        %v1872 = vunpack.c.h.b16 %v884
        %v1873 = vunpack.c.l.b16 %v885
        %v1874 = vunpack.c.h.b16 %v885
        %v1875 = vunpack.c.l.b16 %v886
        %v1876 = vunpack.c.h.b16 %v886
        %v1877 = vunpack.c.l.b16 %v887
        %v1878 = vunpack.c.h.b16 %v887
        %v1879 = vunpack.c.l.b16 %v888
        %v1880 = vunpack.c.h.b16 %v888
        %v1881 = vunpack.c.l.b16 %v889
        %v1882 = vunpack.c.h.b16 %v889
        %v1883 = vunpack.c.l.b16 %v890
        %v1884 = vunpack.c.h.b16 %v890
        %v1885 = vunpack.c.l.b16 %v891
        %v1886 = vunpack.c.h.b16 %v891
        %v1887 = vunpack.c.l.b16 %v892
        %v1888 = vunpack.c.h.b16 %v892
        %v1889 = vunpack.c.l.b16 %v893
        %v1890 = vunpack.c.h.b16 %v893
        %v1891 = vunpack.c.l.b16 %v894
        %v1892 = vunpack.c.h.b16 %v894
        %v1893 = vunpack.c.l.b16 %v895
        %v1894 = vunpack.c.h.b16 %v895
        %v1895 = vunpack.c.l.b16 %v896
        %v1896 = vunpack.c.h.b16 %v896
        %v1897 = vunpack.c.l.b16 %v897
        %v1898 = vunpack.c.h.b16 %v897
        %v1899 = vunpack.c.l.b16 %v898
        %v1900 = vunpack.c.h.b16 %v898
        %v1901 = vunpack.c.l.b16 %v899
        %v1902 = vunpack.c.h.b16 %v899
        %v1903 = vunpack.c.l.b16 %v900
        %v1904 = vunpack.c.h.b16 %v900
        %v1905 = vunpack.c.l.b16 %v901
        %v1906 = vunpack.c.h.b16 %v901
        %v1907 = vunpack.c.l.b16 %v902
        %v1908 = vunpack.c.h.b16 %v902
        %v1909 = vunpack.c.l.b16 %v903
        %v1910 = vunpack.c.h.b16 %v903
        %v1911 = vunpack.c.l.b16 %v904
        %v1912 = vunpack.c.h.b16 %v904
        %v1913 = vunpack.c.l.b16 %v905
        %v1914 = vunpack.c.h.b16 %v905
        %v1915 = vunpack.c.l.b16 %v906
        %v1916 = vunpack.c.h.b16 %v906
        %v1917 = vunpack.c.l.b16 %v907
        %v1918 = vunpack.c.h.b16 %v907
        %v1919 = vunpack.c.l.b16 %v908
        %v1920 = vunpack.c.h.b16 %v908
        %v1921 = vunpack.c.l.b16 %v909
        %v1922 = vunpack.c.h.b16 %v909
        %v1923 = vunpack.c.l.b16 %v910
        %v1924 = vunpack.c.h.b16 %v910
        %v1925 = vunpack.c.l.b16 %v911
        %v1926 = vunpack.c.h.b16 %v911
        %v1927 = vunpack.c.l.b16 %v912
        %v1928 = vunpack.c.h.b16 %v912
        %v1929 = vunpack.c.l.b16 %v913
        %v1930 = vunpack.c.h.b16 %v913
        %v1931 = vunpack.c.l.b16 %v914
        %v1932 = vunpack.c.h.b16 %v914
        %v1933 = vunpack.c.l.b16 %v915
        %v1934 = vunpack.c.h.b16 %v915
        %v1935 = vunpack.c.l.b16 %v916
        %v1936 = vunpack.c.h.b16 %v916
        %v1937 = vunpack.c.l.b16 %v917
        %v1938 = vunpack.c.h.b16 %v917
        %v1939 = vunpack.c.l.b16 %v918
        %v1940 = vunpack.c.h.b16 %v918
        %v1941 = vunpack.c.l.b16 %v919
        %v1942 = vunpack.c.h.b16 %v919
        %v1943 = vunpack.c.l.b16 %v920
        %v1944 = vunpack.c.h.b16 %v920
        %v1945 = vunpack.c.l.b16 %v921
        %v1946 = vunpack.c.h.b16 %v921
        %v1947 = vunpack.c.l.b16 %v922
        %v1948 = vunpack.c.h.b16 %v922
        %v1949 = vunpack.c.l.b16 %v923
        %v1950 = vunpack.c.h.b16 %v923
        %v1951 = vunpack.c.l.b16 %v924
        %v1952 = vunpack.c.h.b16 %v924
        %v1953 = vunpack.c.l.b16 %v925
        %v1954 = vunpack.c.h.b16 %v925
        %v1955 = vunpack.c.l.b16 %v926
        %v1956 = vunpack.c.h.b16 %v926
        %v1957 = vunpack.c.l.b16 %v927
        %v1958 = vunpack.c.h.b16 %v927
        %v1959 = vunpack.c.l.b16 %v928
        %v1960 = vunpack.c.h.b16 %v928
        %v1961 = vunpack.c.l.b16 %v929
        %v1962 = vunpack.c.h.b16 %v929
        %v1963 = vunpack.c.l.b16 %v930
        %v1964 = vunpack.c.h.b16 %v930
        %v1965 = vunpack.c.l.b16 %v931
        %v1966 = vunpack.c.h.b16 %v931
        %v1967 = vunpack.c.l.b16 %v932
        %v1968 = vunpack.c.h.b16 %v932
        %v1969 = vunpack.c.l.b16 %v933
        %v1970 = vunpack.c.h.b16 %v933
        %v1971 = vunpack.c.l.b16 %v934
        %v1972 = vunpack.c.h.b16 %v934
        %v1973 = vunpack.c.l.b16 %v935
        %v1974 = vunpack.c.h.b16 %v935
        %v1975 = vunpack.c.l.b16 %v936
        %v1976 = vunpack.c.h.b16 %v936
        %v1977 = vunpack.c.l.b16 %v937
        %v1978 = vunpack.c.h.b16 %v937
        %v1979 = vunpack.c.l.b16 %v938
        %v1980 = vunpack.c.h.b16 %v938
        %v1981 = vunpack.c.l.b16 %v939
        %v1982 = vunpack.c.h.b16 %v939
        %v1983 = vunpack.c.l.b16 %v940
        %v1984 = vunpack.c.h.b16 %v940
        %v1985 = vunpack.c.l.b16 %v941
        %v1986 = vunpack.c.h.b16 %v941
        %v1987 = vunpack.c.l.b16 %v942
        %v1988 = vunpack.c.h.b16 %v942
        %v1989 = vunpack.c.l.b16 %v943
        %v1990 = vunpack.c.h.b16 %v943
        %v1991 = vunpack.c.l.b16 %v944
        %v1992 = vunpack.c.h.b16 %v944
        %v1993 = vunpack.c.l.b16 %v945
        %v1994 = vunpack.c.h.b16 %v945
        %v1995 = vunpack.c.l.b16 %v946
        %v1996 = vunpack.c.h.b16 %v946
        %v1997 = vunpack.c.l.b16 %v947
        %v1998 = vunpack.c.h.b16 %v947
        %v1999 = vunpack.c.l.b16 %v948
        %v2000 = vunpack.c.h.b16 %v948
        %v2001 = vunpack.c.l.b16 %v949
        %v2002 = vunpack.c.h.b16 %v949
        %v2003 = vpack.c.b16 %v1495, %v1491
        %v2004 = vpack.c.b16 %v1496, %v1492
        %v2005 = vpack.c.b16 %v1497, %v1493
        %v2006 = vpack.c.b16 %v1498, %v1494
        %v2007 = vpack.c.b16 %v1503, %v1499
        %v2008 = vpack.c.b16 %v1504, %v1500
        %v2009 = vpack.c.b16 %v1505, %v1501
        %v2010 = vpack.c.b16 %v1506, %v1502
        %v2011 = vpack.c.b16 %v1511, %v1507
        %v2012 = vpack.c.b16 %v1512, %v1508
        %v2013 = vpack.c.b16 %v1513, %v1509
        %v2014 = vpack.c.b16 %v1514, %v1510
        %v2015 = vpack.c.b16 %v1519, %v1515
        %v2016 = vpack.c.b16 %v1520, %v1516
        %v2017 = vpack.c.b16 %v1521, %v1517
        %v2018 = vpack.c.b16 %v1522, %v1518
        %v2019 = vpack.c.b16 %v1527, %v1523
        %v2020 = vpack.c.b16 %v1528, %v1524
        %v2021 = vpack.c.b16 %v1529, %v1525
        %v2022 = vpack.c.b16 %v1530, %v1526
        %v2023 = vpack.c.b16 %v1535, %v1531
        %v2024 = vpack.c.b16 %v1536, %v1532
        %v2025 = vpack.c.b16 %v1537, %v1533
        %v2026 = vpack.c.b16 %v1538, %v1534
        %v2027 = vpack.c.b16 %v1543, %v1539
        %v2028 = vpack.c.b16 %v1544, %v1540
        %v2029 = vpack.c.b16 %v1545, %v1541
        %v2030 = vpack.c.b16 %v1546, %v1542
        %v2031 = vpack.c.b16 %v1551, %v1547
        %v2032 = vpack.c.b16 %v1552, %v1548
        %v2033 = vpack.c.b16 %v1553, %v1549
        %v2034 = vpack.c.b16 %v1554, %v1550
        %v2035 = vpack.c.b16 %v1559, %v1555
        %v2036 = vpack.c.b16 %v1560, %v1556
        %v2037 = vpack.c.b16 %v1561, %v1557
        %v2038 = vpack.c.b16 %v1562, %v1558
        %v2039 = vpack.c.b16 %v1567, %v1563
        %v2040 = vpack.c.b16 %v1568, %v1564
        %v2041 = vpack.c.b16 %v1569, %v1565
        %v2042 = vpack.c.b16 %v1570, %v1566
        %v2043 = vpack.c.b16 %v1575, %v1571
        %v2044 = vpack.c.b16 %v1576, %v1572
        %v2045 = vpack.c.b16 %v1577, %v1573
        %v2046 = vpack.c.b16 %v1578, %v1574
        %v2047 = vpack.c.b16 %v1583, %v1579
        %v2048 = vpack.c.b16 %v1584, %v1580
        %v2049 = vpack.c.b16 %v1585, %v1581
        %v2050 = vpack.c.b16 %v1586, %v1582
        %v2051 = vpack.c.b16 %v1591, %v1587
        %v2052 = vpack.c.b16 %v1592, %v1588
        %v2053 = vpack.c.b16 %v1593, %v1589
        %v2054 = vpack.c.b16 %v1594, %v1590
        %v2055 = vpack.c.b16 %v1599, %v1595
        %v2056 = vpack.c.b16 %v1600, %v1596
        %v2057 = vpack.c.b16 %v1601, %v1597
        %v2058 = vpack.c.b16 %v1602, %v1598
        %v2059 = vpack.c.b16 %v1607, %v1603
        %v2060 = vpack.c.b16 %v1608, %v1604
        %v2061 = vpack.c.b16 %v1609, %v1605
        %v2062 = vpack.c.b16 %v1610, %v1606
        %v2063 = vpack.c.b16 %v1615, %v1611
        %v2064 = vpack.c.b16 %v1616, %v1612
        %v2065 = vpack.c.b16 %v1617, %v1613
        %v2066 = vpack.c.b16 %v1618, %v1614
        %v2067 = vpack.c.b16 %v1623, %v1619
        %v2068 = vpack.c.b16 %v1624, %v1620
        %v2069 = vpack.c.b16 %v1625, %v1621
        %v2070 = vpack.c.b16 %v1626, %v1622
        %v2071 = vpack.c.b16 %v1631, %v1627
        %v2072 = vpack.c.b16 %v1632, %v1628
        %v2073 = vpack.c.b16 %v1633, %v1629
        %v2074 = vpack.c.b16 %v1634, %v1630
        %v2075 = vpack.c.b16 %v1639, %v1635
        %v2076 = vpack.c.b16 %v1640, %v1636
        %v2077 = vpack.c.b16 %v1641, %v1637
        %v2078 = vpack.c.b16 %v1642, %v1638
        %v2079 = vpack.c.b16 %v1647, %v1643
        %v2080 = vpack.c.b16 %v1648, %v1644
        %v2081 = vpack.c.b16 %v1649, %v1645
        %v2082 = vpack.c.b16 %v1650, %v1646
        %v2083 = vpack.c.b16 %v1655, %v1651
        %v2084 = vpack.c.b16 %v1656, %v1652
        %v2085 = vpack.c.b16 %v1657, %v1653
        %v2086 = vpack.c.b16 %v1658, %v1654
        %v2087 = vpack.c.b16 %v1663, %v1659
        %v2088 = vpack.c.b16 %v1664, %v1660
        %v2089 = vpack.c.b16 %v1665, %v1661
        %v2090 = vpack.c.b16 %v1666, %v1662
        %v2091 = vpack.c.b16 %v1671, %v1667
        %v2092 = vpack.c.b16 %v1672, %v1668
        %v2093 = vpack.c.b16 %v1673, %v1669
        %v2094 = vpack.c.b16 %v1674, %v1670
        %v2095 = vpack.c.b16 %v1679, %v1675
        %v2096 = vpack.c.b16 %v1680, %v1676
        %v2097 = vpack.c.b16 %v1681, %v1677
        %v2098 = vpack.c.b16 %v1682, %v1678
        %v2099 = vpack.c.b16 %v1687, %v1683
        %v2100 = vpack.c.b16 %v1688, %v1684
        %v2101 = vpack.c.b16 %v1689, %v1685
        %v2102 = vpack.c.b16 %v1690, %v1686
        %v2103 = vpack.c.b16 %v1695, %v1691
        %v2104 = vpack.c.b16 %v1696, %v1692
        %v2105 = vpack.c.b16 %v1697, %v1693
        %v2106 = vpack.c.b16 %v1698, %v1694
        %v2107 = vpack.c.b16 %v1703, %v1699
        %v2108 = vpack.c.b16 %v1704, %v1700
        %v2109 = vpack.c.b16 %v1705, %v1701
        %v2110 = vpack.c.b16 %v1706, %v1702
        %v2111 = vpack.c.b16 %v1711, %v1707
        %v2112 = vpack.c.b16 %v1712, %v1708
        %v2113 = vpack.c.b16 %v1713, %v1709
        %v2114 = vpack.c.b16 %v1714, %v1710
        %v2115 = vpack.c.b16 %v1719, %v1715
        %v2116 = vpack.c.b16 %v1720, %v1716
        %v2117 = vpack.c.b16 %v1721, %v1717
        %v2118 = vpack.c.b16 %v1722, %v1718
        %v2119 = vpack.c.b16 %v1727, %v1723
        %v2120 = vpack.c.b16 %v1728, %v1724
        %v2121 = vpack.c.b16 %v1729, %v1725
        %v2122 = vpack.c.b16 %v1730, %v1726
        %v2123 = vpack.c.b16 %v1735, %v1731
        %v2124 = vpack.c.b16 %v1736, %v1732
        %v2125 = vpack.c.b16 %v1737, %v1733
        %v2126 = vpack.c.b16 %v1738, %v1734
        %v2127 = vpack.c.b16 %v1743, %v1739
        %v2128 = vpack.c.b16 %v1744, %v1740
        %v2129 = vpack.c.b16 %v1745, %v1741
        %v2130 = vpack.c.b16 %v1746, %v1742
        %v2131 = vpack.c.b16 %v1751, %v1747
        %v2132 = vpack.c.b16 %v1752, %v1748
        %v2133 = vpack.c.b16 %v1753, %v1749
        %v2134 = vpack.c.b16 %v1754, %v1750
        %v2135 = vpack.c.b16 %v1759, %v1755
        %v2136 = vpack.c.b16 %v1760, %v1756
        %v2137 = vpack.c.b16 %v1761, %v1757
        %v2138 = vpack.c.b16 %v1762, %v1758
        %v2139 = vpack.c.b16 %v1767, %v1763
        %v2140 = vpack.c.b16 %v1768, %v1764
        %v2141 = vpack.c.b16 %v1769, %v1765
        %v2142 = vpack.c.b16 %v1770, %v1766
        %v2143 = vpack.c.b16 %v1775, %v1771
        %v2144 = vpack.c.b16 %v1776, %v1772
        %v2145 = vpack.c.b16 %v1777, %v1773
        %v2146 = vpack.c.b16 %v1778, %v1774
        %v2147 = vpack.c.b16 %v1783, %v1779
        %v2148 = vpack.c.b16 %v1784, %v1780
        %v2149 = vpack.c.b16 %v1785, %v1781
        %v2150 = vpack.c.b16 %v1786, %v1782
        %v2151 = vpack.c.b16 %v1791, %v1787
        %v2152 = vpack.c.b16 %v1792, %v1788
        %v2153 = vpack.c.b16 %v1793, %v1789
        %v2154 = vpack.c.b16 %v1794, %v1790
        %v2155 = vpack.c.b16 %v1799, %v1795
        %v2156 = vpack.c.b16 %v1800, %v1796
        %v2157 = vpack.c.b16 %v1801, %v1797
        %v2158 = vpack.c.b16 %v1802, %v1798
        %v2159 = vpack.c.b16 %v1807, %v1803
        %v2160 = vpack.c.b16 %v1808, %v1804
        %v2161 = vpack.c.b16 %v1809, %v1805
        %v2162 = vpack.c.b16 %v1810, %v1806
        %v2163 = vpack.c.b16 %v1815, %v1811
        %v2164 = vpack.c.b16 %v1816, %v1812
        %v2165 = vpack.c.b16 %v1817, %v1813
        %v2166 = vpack.c.b16 %v1818, %v1814
        %v2167 = vpack.c.b16 %v1823, %v1819
        %v2168 = vpack.c.b16 %v1824, %v1820
        %v2169 = vpack.c.b16 %v1825, %v1821
        %v2170 = vpack.c.b16 %v1826, %v1822
        %v2171 = vpack.c.b16 %v1831, %v1827
        %v2172 = vpack.c.b16 %v1832, %v1828
        %v2173 = vpack.c.b16 %v1833, %v1829
        %v2174 = vpack.c.b16 %v1834, %v1830
        %v2175 = vpack.c.b16 %v1839, %v1835
        %v2176 = vpack.c.b16 %v1840, %v1836
        %v2177 = vpack.c.b16 %v1841, %v1837
        %v2178 = vpack.c.b16 %v1842, %v1838
        %v2179 = vpack.c.b16 %v1847, %v1843
        %v2180 = vpack.c.b16 %v1848, %v1844
        %v2181 = vpack.c.b16 %v1849, %v1845
        %v2182 = vpack.c.b16 %v1850, %v1846
        %v2183 = vpack.c.b16 %v1855, %v1851
        %v2184 = vpack.c.b16 %v1856, %v1852
        %v2185 = vpack.c.b16 %v1857, %v1853
        %v2186 = vpack.c.b16 %v1858, %v1854
        %v2187 = vpack.c.b16 %v1863, %v1859
        %v2188 = vpack.c.b16 %v1864, %v1860
        %v2189 = vpack.c.b16 %v1865, %v1861
        %v2190 = vpack.c.b16 %v1866, %v1862
        %v2191 = vpack.c.b16 %v1871, %v1867
        %v2192 = vpack.c.b16 %v1872, %v1868
        %v2193 = vpack.c.b16 %v1873, %v1869
        %v2194 = vpack.c.b16 %v1874, %v1870
        %v2195 = vpack.c.b16 %v1879, %v1875
        %v2196 = vpack.c.b16 %v1880, %v1876
        %v2197 = vpack.c.b16 %v1881, %v1877
        %v2198 = vpack.c.b16 %v1882, %v1878
        %v2199 = vpack.c.b16 %v1887, %v1883
        %v2200 = vpack.c.b16 %v1888, %v1884
        %v2201 = vpack.c.b16 %v1889, %v1885
        %v2202 = vpack.c.b16 %v1890, %v1886
        %v2203 = vpack.c.b16 %v1895, %v1891
        %v2204 = vpack.c.b16 %v1896, %v1892
        %v2205 = vpack.c.b16 %v1897, %v1893
        %v2206 = vpack.c.b16 %v1898, %v1894
        %v2207 = vpack.c.b16 %v1903, %v1899
        %v2208 = vpack.c.b16 %v1904, %v1900
        %v2209 = vpack.c.b16 %v1905, %v1901
        %v2210 = vpack.c.b16 %v1906, %v1902
        %v2211 = vpack.c.b16 %v1911, %v1907
        %v2212 = vpack.c.b16 %v1912, %v1908
        %v2213 = vpack.c.b16 %v1913, %v1909
        %v2214 = vpack.c.b16 %v1914, %v1910
        %v2215 = vpack.c.b16 %v1919, %v1915
        %v2216 = vpack.c.b16 %v1920, %v1916
        %v2217 = vpack.c.b16 %v1921, %v1917
        %v2218 = vpack.c.b16 %v1922, %v1918
        %v2219 = vpack.c.b16 %v1927, %v1923
        %v2220 = vpack.c.b16 %v1928, %v1924
        %v2221 = vpack.c.b16 %v1929, %v1925
        %v2222 = vpack.c.b16 %v1930, %v1926
        %v2223 = vpack.c.b16 %v1935, %v1931
        %v2224 = vpack.c.b16 %v1936, %v1932
        %v2225 = vpack.c.b16 %v1937, %v1933
        %v2226 = vpack.c.b16 %v1938, %v1934
        %v2227 = vpack.c.b16 %v1943, %v1939
        %v2228 = vpack.c.b16 %v1944, %v1940
        %v2229 = vpack.c.b16 %v1945, %v1941
        %v2230 = vpack.c.b16 %v1946, %v1942
        %v2231 = vpack.c.b16 %v1951, %v1947
        %v2232 = vpack.c.b16 %v1952, %v1948
        %v2233 = vpack.c.b16 %v1953, %v1949
        %v2234 = vpack.c.b16 %v1954, %v1950
        %v2235 = vpack.c.b16 %v1959, %v1955
        %v2236 = vpack.c.b16 %v1960, %v1956
        %v2237 = vpack.c.b16 %v1961, %v1957
        %v2238 = vpack.c.b16 %v1962, %v1958
        %v2239 = vpack.c.b16 %v1967, %v1963
        %v2240 = vpack.c.b16 %v1968, %v1964
        %v2241 = vpack.c.b16 %v1969, %v1965
        %v2242 = vpack.c.b16 %v1970, %v1966
        %v2243 = vpack.c.b16 %v1975, %v1971
        %v2244 = vpack.c.b16 %v1976, %v1972
        %v2245 = vpack.c.b16 %v1977, %v1973
        %v2246 = vpack.c.b16 %v1978, %v1974
        %v2247 = vpack.c.b16 %v1983, %v1979
        %v2248 = vpack.c.b16 %v1984, %v1980
        %v2249 = vpack.c.b16 %v1985, %v1981
        %v2250 = vpack.c.b16 %v1986, %v1982
        %v2251 = vpack.c.b16 %v1991, %v1987
        %v2252 = vpack.c.b16 %v1992, %v1988
        %v2253 = vpack.c.b16 %v1993, %v1989
        %v2254 = vpack.c.b16 %v1994, %v1990
        %v2255 = vpack.c.b16 %v1999, %v1995
        %v2256 = vpack.c.b16 %v2000, %v1996
        %v2257 = vpack.c.b16 %v2001, %v1997
        %v2258 = vpack.c.b16 %v2002, %v1998
        %2515 = vmatprep.subr.bf16.mxu0 %v2004
        %2516 = vmatpush1.bf16.msra.mxu0 %v2003
        %2517 = vmatprep.subr.bf16.mxu0 %v2008
        %2518 = vmatpush1.bf16.msra.mxu0 %v2007
        %2519 = vmatprep.subr.bf16.mxu0 %v2012
        %2520 = vmatpush1.bf16.msra.mxu0 %v2011
        %2521 = vmatprep.subr.bf16.mxu0 %v2016
        %2522 = vmatpush1.bf16.msra.mxu0 %v2015
        %2523 = vmatprep.subr.bf16.mxu0 %v2020
        %2524 = vmatpush1.bf16.msra.mxu0 %v2019
        %2525 = vmatprep.subr.bf16.mxu0 %v2024
        %2526 = vmatpush1.bf16.msra.mxu0 %v2023
        %2527 = vmatprep.subr.bf16.mxu0 %v2028
        %2528 = vmatpush1.bf16.msra.mxu0 %v2027
        %2529 = vmatprep.subr.bf16.mxu0 %v2032
        %2530 = vmatpush1.bf16.msra.mxu0 %v2031
        %2531 = vmatprep.subr.bf16.mxu0 %v2036
        %2532 = vmatpush1.bf16.msra.mxu0 %v2035
        %2533 = vmatprep.subr.bf16.mxu0 %v2040
        %2534 = vmatpush1.bf16.msra.mxu0 %v2039
        %2535 = vmatprep.subr.bf16.mxu0 %v2044
        %2536 = vmatpush1.bf16.msra.mxu0 %v2043
        %2537 = vmatprep.subr.bf16.mxu0 %v2048
        %2538 = vmatpush1.bf16.msra.mxu0 %v2047
        %2539 = vmatprep.subr.bf16.mxu0 %v2052
        %2540 = vmatpush1.bf16.msra.mxu0 %v2051
        %2541 = vmatprep.subr.bf16.mxu0 %v2056
        %2542 = vmatpush1.bf16.msra.mxu0 %v2055
        %2543 = vmatprep.subr.bf16.mxu0 %v2060
        %2544 = vmatpush1.bf16.msra.mxu0 %v2059
        %2545 = vmatprep.subr.bf16.mxu0 %v2064
        %2546 = vmatpush1.bf16.msra.mxu0 %v2063
        %2547 = vmatprep.mubr.bf16.mxu0 %v1220
        %2548 = vmatmul.mubr.bf16.gmra.mrb[0].mxu0 %v1219
        %v2549 = vpop.f32.mrb[0].mxu0
        %v2550 = vadd.f32 %v955, %v2549
        %v2551 = vpop.f32.mrb[0].mxu0
        %v2552 = vadd.f32 %v959, %v2551
        %v2553 = vpop.f32.mrb[0].mxu0
        %v2554 = vpop.f32.mrb[0].mxu0
        %2555 = vdwg.mxu0
        %2556 = vmatprep.subr.bf16.mxu0 %v2068
        %2557 = vmatpush1.bf16.msra.mxu0 %v2067
        %2558 = vmatprep.subr.bf16.mxu0 %v2072
        %2559 = vmatpush1.bf16.msra.mxu0 %v2071
        %2560 = vmatprep.subr.bf16.mxu0 %v2076
        %2561 = vmatpush1.bf16.msra.mxu0 %v2075
        %2562 = vmatprep.subr.bf16.mxu0 %v2080
        %2563 = vmatpush1.bf16.msra.mxu0 %v2079
        %2564 = vmatprep.subr.bf16.mxu0 %v2084
        %2565 = vmatpush1.bf16.msra.mxu0 %v2083
        %2566 = vmatprep.subr.bf16.mxu0 %v2088
        %2567 = vmatpush1.bf16.msra.mxu0 %v2087
        %2568 = vmatprep.subr.bf16.mxu0 %v2092
        %2569 = vmatpush1.bf16.msra.mxu0 %v2091
        %2570 = vmatprep.subr.bf16.mxu0 %v2096
        %2571 = vmatpush1.bf16.msra.mxu0 %v2095
        %2572 = vmatprep.subr.bf16.mxu0 %v2100
        %2573 = vmatpush1.bf16.msra.mxu0 %v2099
        %2574 = vmatprep.subr.bf16.mxu0 %v2104
        %2575 = vmatpush1.bf16.msra.mxu0 %v2103
        %2576 = vmatprep.subr.bf16.mxu0 %v2108
        %2577 = vmatpush1.bf16.msra.mxu0 %v2107
        %2578 = vmatprep.subr.bf16.mxu0 %v2112
        %2579 = vmatpush1.bf16.msra.mxu0 %v2111
        %2580 = vmatprep.subr.bf16.mxu0 %v2116
        %2581 = vmatpush1.bf16.msra.mxu0 %v2115
        %2582 = vmatprep.subr.bf16.mxu0 %v2120
        %2583 = vmatpush1.bf16.msra.mxu0 %v2119
        %2584 = vmatprep.subr.bf16.mxu0 %v2124
        %2585 = vmatpush1.bf16.msra.mxu0 %v2123
        %2586 = vmatprep.subr.bf16.mxu0 %v2128
        %2587 = vmatpush1.bf16.msra.mxu0 %v2127
        %2588 = vmatprep.mubr.bf16.mxu0 %v1222
        %2589 = vmatmul.mubr.bf16.gmra.mrb[0].mxu0 %v1221
        %v2590 = vpop.f32.mrb[0].mxu0
        %v2591 = vadd.f32 %v2550, %v2590
        %v2592 = vpop.f32.mrb[0].mxu0
        %v2593 = vadd.f32 %v2552, %v2592
        %v2594 = vpop.f32.mrb[0].mxu0
        %v2595 = vpop.f32.mrb[0].mxu0
        %2596 = vdwg.mxu0
        %2597 = vmatprep.subr.bf16.mxu0 %v2132
        %2598 = vmatpush1.bf16.msra.mxu0 %v2131
        %2599 = vmatprep.subr.bf16.mxu0 %v2136
        %2600 = vmatpush1.bf16.msra.mxu0 %v2135
        %2601 = vmatprep.subr.bf16.mxu0 %v2140
        %2602 = vmatpush1.bf16.msra.mxu0 %v2139
        %2603 = vmatprep.subr.bf16.mxu0 %v2144
        %2604 = vmatpush1.bf16.msra.mxu0 %v2143
        %2605 = vmatprep.subr.bf16.mxu0 %v2148
        %2606 = vmatpush1.bf16.msra.mxu0 %v2147
        %2607 = vmatprep.subr.bf16.mxu0 %v2152
        %2608 = vmatpush1.bf16.msra.mxu0 %v2151
        %2609 = vmatprep.subr.bf16.mxu0 %v2156
        %2610 = vmatpush1.bf16.msra.mxu0 %v2155
        %2611 = vmatprep.subr.bf16.mxu0 %v2160
        %2612 = vmatpush1.bf16.msra.mxu0 %v2159
        %2613 = vmatprep.subr.bf16.mxu0 %v2164
        %2614 = vmatpush1.bf16.msra.mxu0 %v2163
        %2615 = vmatprep.subr.bf16.mxu0 %v2168
        %2616 = vmatpush1.bf16.msra.mxu0 %v2167
        %2617 = vmatprep.subr.bf16.mxu0 %v2172
        %2618 = vmatpush1.bf16.msra.mxu0 %v2171
        %2619 = vmatprep.subr.bf16.mxu0 %v2176
        %2620 = vmatpush1.bf16.msra.mxu0 %v2175
        %2621 = vmatprep.subr.bf16.mxu0 %v2180
        %2622 = vmatpush1.bf16.msra.mxu0 %v2179
        %2623 = vmatprep.subr.bf16.mxu0 %v2184
        %2624 = vmatpush1.bf16.msra.mxu0 %v2183
        %2625 = vmatprep.subr.bf16.mxu0 %v2188
        %2626 = vmatpush1.bf16.msra.mxu0 %v2187
        %2627 = vmatprep.subr.bf16.mxu0 %v2192
        %2628 = vmatpush1.bf16.msra.mxu0 %v2191
        %2629 = vmatprep.mubr.bf16.mxu0 %v1224
        %2630 = vmatmul.mubr.bf16.gmra.mrb[0].mxu0 %v1223
        %v2631 = vpop.f32.mrb[0].mxu0
        %v2632 = vadd.f32 %v2591, %v2631
        %v2633 = vpop.f32.mrb[0].mxu0
        %v2634 = vadd.f32 %v2593, %v2633
        %v2635 = vpop.f32.mrb[0].mxu0
        %v2636 = vpop.f32.mrb[0].mxu0
        %2637 = vdwg.mxu0
        %2638 = vmatprep.subr.bf16.mxu0 %v2196
        %2639 = vmatpush1.bf16.msra.mxu0 %v2195
        %2640 = vmatprep.subr.bf16.mxu0 %v2200
        %2641 = vmatpush1.bf16.msra.mxu0 %v2199
        %2642 = vmatprep.subr.bf16.mxu0 %v2204
        %2643 = vmatpush1.bf16.msra.mxu0 %v2203
        %2644 = vmatprep.subr.bf16.mxu0 %v2208
        %2645 = vmatpush1.bf16.msra.mxu0 %v2207
        %2646 = vmatprep.subr.bf16.mxu0 %v2212
        %2647 = vmatpush1.bf16.msra.mxu0 %v2211
        %2648 = vmatprep.subr.bf16.mxu0 %v2216
        %2649 = vmatpush1.bf16.msra.mxu0 %v2215
        %2650 = vmatprep.subr.bf16.mxu0 %v2220
        %2651 = vmatpush1.bf16.msra.mxu0 %v2219
        %2652 = vmatprep.subr.bf16.mxu0 %v2224
        %2653 = vmatpush1.bf16.msra.mxu0 %v2223
        %2654 = vmatprep.subr.bf16.mxu0 %v2228
        %2655 = vmatpush1.bf16.msra.mxu0 %v2227
        %2656 = vmatprep.subr.bf16.mxu0 %v2232
        %2657 = vmatpush1.bf16.msra.mxu0 %v2231
        %2658 = vmatprep.subr.bf16.mxu0 %v2236
        %2659 = vmatpush1.bf16.msra.mxu0 %v2235
        %2660 = vmatprep.subr.bf16.mxu0 %v2240
        %2661 = vmatpush1.bf16.msra.mxu0 %v2239
        %2662 = vmatprep.subr.bf16.mxu0 %v2244
        %2663 = vmatpush1.bf16.msra.mxu0 %v2243
        %2664 = vmatprep.subr.bf16.mxu0 %v2248
        %2665 = vmatpush1.bf16.msra.mxu0 %v2247
        %2666 = vmatprep.subr.bf16.mxu0 %v2252
        %2667 = vmatpush1.bf16.msra.mxu0 %v2251
        %2668 = vmatprep.subr.bf16.mxu0 %v2256
        %2669 = vmatpush1.bf16.msra.mxu0 %v2255
        %2670 = vmatprep.mubr.bf16.mxu0 %v1226
        %2671 = vmatmul.mubr.bf16.gmra.mrb[0].mxu0 %v1225
        %v2672 = vpop.f32.mrb[0].mxu0
        %v2673 = vadd.f32 %v2632, %v2672
        %v2674 = vpop.f32.mrb[0].mxu0
        %v2675 = vadd.f32 %v2634, %v2674
        %v2676 = vpop.f32.mrb[0].mxu0
        %v2677 = vpop.f32.mrb[0].mxu0
        %2678 = vdwg.mxu0
        %2679 = vmatprep.subr.bf16.mxu0 %v2006
        %2680 = vmatpush1.bf16.msra.mxu0 %v2005
        %2681 = vmatprep.subr.bf16.mxu0 %v2010
        %2682 = vmatpush1.bf16.msra.mxu0 %v2009
        %2683 = vmatprep.subr.bf16.mxu0 %v2014
        %2684 = vmatpush1.bf16.msra.mxu0 %v2013
        %2685 = vmatprep.subr.bf16.mxu0 %v2018
        %2686 = vmatpush1.bf16.msra.mxu0 %v2017
        %2687 = vmatprep.subr.bf16.mxu0 %v2022
        %2688 = vmatpush1.bf16.msra.mxu0 %v2021
        %2689 = vmatprep.subr.bf16.mxu0 %v2026
        %2690 = vmatpush1.bf16.msra.mxu0 %v2025
        %2691 = vmatprep.subr.bf16.mxu0 %v2030
        %2692 = vmatpush1.bf16.msra.mxu0 %v2029
        %2693 = vmatprep.subr.bf16.mxu0 %v2034
        %2694 = vmatpush1.bf16.msra.mxu0 %v2033
        %2695 = vmatprep.subr.bf16.mxu0 %v2038
        %2696 = vmatpush1.bf16.msra.mxu0 %v2037
        %2697 = vmatprep.subr.bf16.mxu0 %v2042
        %2698 = vmatpush1.bf16.msra.mxu0 %v2041
        %2699 = vmatprep.subr.bf16.mxu0 %v2046
        %2700 = vmatpush1.bf16.msra.mxu0 %v2045
        %2701 = vmatprep.subr.bf16.mxu0 %v2050
        %2702 = vmatpush1.bf16.msra.mxu0 %v2049
        %2703 = vmatprep.subr.bf16.mxu0 %v2054
        %2704 = vmatpush1.bf16.msra.mxu0 %v2053
        %2705 = vmatprep.subr.bf16.mxu0 %v2058
        %2706 = vmatpush1.bf16.msra.mxu0 %v2057
        %2707 = vmatprep.subr.bf16.mxu0 %v2062
        %2708 = vmatpush1.bf16.msra.mxu0 %v2061
        %2709 = vmatprep.subr.bf16.mxu0 %v2066
        %2710 = vmatpush1.bf16.msra.mxu0 %v2065
        %2711 = vmatprep.mubr.bf16.mxu0 %v1220
        %2712 = vmatmul.mubr.bf16.gmra.mrb[0].mxu0 %v1219
        %v2713 = vpop.f32.mrb[0].mxu0
        %v2714 = vadd.f32 %v963, %v2713
        %v2715 = vpop.f32.mrb[0].mxu0
        %v2716 = vadd.f32 %v967, %v2715
        %v2717 = vpop.f32.mrb[0].mxu0
        %v2718 = vpop.f32.mrb[0].mxu0
        %2719 = vdwg.mxu0
        %2720 = vmatprep.subr.bf16.mxu0 %v2070
        %2721 = vmatpush1.bf16.msra.mxu0 %v2069
        %2722 = vmatprep.subr.bf16.mxu0 %v2074
        %2723 = vmatpush1.bf16.msra.mxu0 %v2073
        %2724 = vmatprep.subr.bf16.mxu0 %v2078
        %2725 = vmatpush1.bf16.msra.mxu0 %v2077
        %2726 = vmatprep.subr.bf16.mxu0 %v2082
        %2727 = vmatpush1.bf16.msra.mxu0 %v2081
        %2728 = vmatprep.subr.bf16.mxu0 %v2086
        %2729 = vmatpush1.bf16.msra.mxu0 %v2085
        %2730 = vmatprep.subr.bf16.mxu0 %v2090
        %2731 = vmatpush1.bf16.msra.mxu0 %v2089
        %2732 = vmatprep.subr.bf16.mxu0 %v2094
        %2733 = vmatpush1.bf16.msra.mxu0 %v2093
        %2734 = vmatprep.subr.bf16.mxu0 %v2098
        %2735 = vmatpush1.bf16.msra.mxu0 %v2097
        %2736 = vmatprep.subr.bf16.mxu0 %v2102
        %2737 = vmatpush1.bf16.msra.mxu0 %v2101
        %2738 = vmatprep.subr.bf16.mxu0 %v2106
        %2739 = vmatpush1.bf16.msra.mxu0 %v2105
        %2740 = vmatprep.subr.bf16.mxu0 %v2110
        %2741 = vmatpush1.bf16.msra.mxu0 %v2109
        %2742 = vmatprep.subr.bf16.mxu0 %v2114
        %2743 = vmatpush1.bf16.msra.mxu0 %v2113
        %2744 = vmatprep.subr.bf16.mxu0 %v2118
        %2745 = vmatpush1.bf16.msra.mxu0 %v2117
        %2746 = vmatprep.subr.bf16.mxu0 %v2122
        %2747 = vmatpush1.bf16.msra.mxu0 %v2121
        %2748 = vmatprep.subr.bf16.mxu0 %v2126
        %2749 = vmatpush1.bf16.msra.mxu0 %v2125
        %2750 = vmatprep.subr.bf16.mxu0 %v2130
        %2751 = vmatpush1.bf16.msra.mxu0 %v2129
        %2752 = vmatprep.mubr.bf16.mxu0 %v1222
        %2753 = vmatmul.mubr.bf16.gmra.mrb[0].mxu0 %v1221
        %v2754 = vpop.f32.mrb[0].mxu0
        %v2755 = vadd.f32 %v2714, %v2754
        %v2756 = vpop.f32.mrb[0].mxu0
        %v2757 = vadd.f32 %v2716, %v2756
        %v2758 = vpop.f32.mrb[0].mxu0
        %v2759 = vpop.f32.mrb[0].mxu0
        %2760 = vdwg.mxu0
        %2761 = vmatprep.subr.bf16.mxu0 %v2134
        %2762 = vmatpush1.bf16.msra.mxu0 %v2133
        %2763 = vmatprep.subr.bf16.mxu0 %v2138
        %2764 = vmatpush1.bf16.msra.mxu0 %v2137
        %2765 = vmatprep.subr.bf16.mxu0 %v2142
        %2766 = vmatpush1.bf16.msra.mxu0 %v2141
        %2767 = vmatprep.subr.bf16.mxu0 %v2146
        %2768 = vmatpush1.bf16.msra.mxu0 %v2145
        %2769 = vmatprep.subr.bf16.mxu0 %v2150
        %2770 = vmatpush1.bf16.msra.mxu0 %v2149
        %2771 = vmatprep.subr.bf16.mxu0 %v2154
        %2772 = vmatpush1.bf16.msra.mxu0 %v2153
        %2773 = vmatprep.subr.bf16.mxu0 %v2158
        %2774 = vmatpush1.bf16.msra.mxu0 %v2157
        %2775 = vmatprep.subr.bf16.mxu0 %v2162
        %2776 = vmatpush1.bf16.msra.mxu0 %v2161
        %2777 = vmatprep.subr.bf16.mxu0 %v2166
        %2778 = vmatpush1.bf16.msra.mxu0 %v2165
        %2779 = vmatprep.subr.bf16.mxu0 %v2170
        %2780 = vmatpush1.bf16.msra.mxu0 %v2169
        %2781 = vmatprep.subr.bf16.mxu0 %v2174
        %2782 = vmatpush1.bf16.msra.mxu0 %v2173
        %2783 = vmatprep.subr.bf16.mxu0 %v2178
        %2784 = vmatpush1.bf16.msra.mxu0 %v2177
        %2785 = vmatprep.subr.bf16.mxu0 %v2182
        %2786 = vmatpush1.bf16.msra.mxu0 %v2181
        %2787 = vmatprep.subr.bf16.mxu0 %v2186
        %2788 = vmatpush1.bf16.msra.mxu0 %v2185
        %2789 = vmatprep.subr.bf16.mxu0 %v2190
        %2790 = vmatpush1.bf16.msra.mxu0 %v2189
        %2791 = vmatprep.subr.bf16.mxu0 %v2194
        %2792 = vmatpush1.bf16.msra.mxu0 %v2193
        %2793 = vmatprep.mubr.bf16.mxu0 %v1224
        %2794 = vmatmul.mubr.bf16.gmra.mrb[0].mxu0 %v1223
        %v2795 = vpop.f32.mrb[0].mxu0
        %v2796 = vadd.f32 %v2755, %v2795
        %v2797 = vpop.f32.mrb[0].mxu0
        %v2798 = vadd.f32 %v2757, %v2797
        %v2799 = vpop.f32.mrb[0].mxu0
        %v2800 = vpop.f32.mrb[0].mxu0
        %2801 = vdwg.mxu0
        %2802 = vmatprep.subr.bf16.mxu0 %v2198
        %2803 = vmatpush1.bf16.msra.mxu0 %v2197
        %2804 = vmatprep.subr.bf16.mxu0 %v2202
        %2805 = vmatpush1.bf16.msra.mxu0 %v2201
        %2806 = vmatprep.subr.bf16.mxu0 %v2206
        %2807 = vmatpush1.bf16.msra.mxu0 %v2205
        %2808 = vmatprep.subr.bf16.mxu0 %v2210
        %2809 = vmatpush1.bf16.msra.mxu0 %v2209
        %2810 = vmatprep.subr.bf16.mxu0 %v2214
        %2811 = vmatpush1.bf16.msra.mxu0 %v2213
        %2812 = vmatprep.subr.bf16.mxu0 %v2218
        %2813 = vmatpush1.bf16.msra.mxu0 %v2217
        %2814 = vmatprep.subr.bf16.mxu0 %v2222
        %2815 = vmatpush1.bf16.msra.mxu0 %v2221
        %2816 = vmatprep.subr.bf16.mxu0 %v2226
        %2817 = vmatpush1.bf16.msra.mxu0 %v2225
        %2818 = vmatprep.subr.bf16.mxu0 %v2230
        %2819 = vmatpush1.bf16.msra.mxu0 %v2229
        %2820 = vmatprep.subr.bf16.mxu0 %v2234
        %2821 = vmatpush1.bf16.msra.mxu0 %v2233
        %2822 = vmatprep.subr.bf16.mxu0 %v2238
        %2823 = vmatpush1.bf16.msra.mxu0 %v2237
        %2824 = vmatprep.subr.bf16.mxu0 %v2242
        %2825 = vmatpush1.bf16.msra.mxu0 %v2241
        %2826 = vmatprep.subr.bf16.mxu0 %v2246
        %2827 = vmatpush1.bf16.msra.mxu0 %v2245
        %2828 = vmatprep.subr.bf16.mxu0 %v2250
        %2829 = vmatpush1.bf16.msra.mxu0 %v2249
        %2830 = vmatprep.subr.bf16.mxu0 %v2254
        %2831 = vmatpush1.bf16.msra.mxu0 %v2253
        %2832 = vmatprep.subr.bf16.mxu0 %v2258
        %2833 = vmatpush1.bf16.msra.mxu0 %v2257
        %2834 = vmatprep.mubr.bf16.mxu0 %v1226
        %2835 = vmatmul.mubr.bf16.gmra.mrb[0].mxu0 %v1225
        %v2836 = vpop.f32.mrb[0].mxu0
        %v2837 = vadd.f32 %v2796, %v2836
        %v2838 = vpop.f32.mrb[0].mxu0
        %v2839 = vadd.f32 %v2798, %v2838
        %v2840 = vpop.f32.mrb[0].mxu0
        %v2841 = vpop.f32.mrb[0].mxu0
        %2842 = vdwg.mxu0
        %v2843 = vtanh.pop %v2673
        %v2844 = vtanh.pop %v2675
        %v2845 = vtanh.pop %v2837
        %v2846 = vtanh.pop %v2839
        %v2847 = vld [vmem:[#allocation3] sm:$0xff]
        %v2848 = vld [vmem:[%s272] sm:$0xff]
        %v2849 = vld [vmem:[%s272 + $0x8] sm:$0xff]
        %v2850 = vld [vmem:[%s272 + $0x10] sm:$0xff]
        %v2851 = vld [vmem:[%s272 + $0x18] sm:$0xff]
        %v2852 = vld [vmem:[%s272 + $0x20] sm:$0xff]
        %v2853 = vld [vmem:[%s272 + $0x28] sm:$0xff]
        %v2854 = vld [vmem:[%s272 + $0x30] sm:$0xff]
        %v2855 = vld [vmem:[%s272 + $0x38] sm:$0xff]
        %v2856 = vld [vmem:[%s272 + $0x40] sm:$0xff]
        %v2857 = vld [vmem:[%s272 + $0x48] sm:$0xff]
        %v2858 = vld [vmem:[%s272 + $0x50] sm:$0xff]
        %v2859 = vld [vmem:[%s272 + $0x58] sm:$0xff]
        %v2860 = vld [vmem:[%s272 + $0x60] sm:$0xff]
        %v2861 = vld [vmem:[%s272 + $0x68] sm:$0xff]
        %v2862 = vld [vmem:[%s272 + $0x70] sm:$0xff]
        %v2863 = vld [vmem:[%s272 + $0x78] sm:$0xff]
        %v2864 = vld [vmem:[%s272 + $0x80] sm:$0xff]
        %v2865 = vld [vmem:[%s272 + $0x88] sm:$0xff]
        %v2866 = vld [vmem:[%s272 + $0x90] sm:$0xff]
        %v2867 = vld [vmem:[%s272 + $0x98] sm:$0xff]
        %v2868 = vld [vmem:[%s272 + $0xa0] sm:$0xff]
        %v2869 = vld [vmem:[%s272 + $0xa8] sm:$0xff]
        %v2870 = vld [vmem:[%s272 + $0xb0] sm:$0xff]
        %v2871 = vld [vmem:[%s272 + $0xb8] sm:$0xff]
        %v2872 = vld [vmem:[%s272 + $0xc0] sm:$0xff]
        %v2873 = vld [vmem:[%s272 + $0xc8] sm:$0xff]
        %v2874 = vld [vmem:[%s272 + $0xd0] sm:$0xff]
        %v2875 = vld [vmem:[%s272 + $0xd8] sm:$0xff]
        %v2876 = vld [vmem:[%s272 + $0xe0] sm:$0xff]
        %v2877 = vld [vmem:[%s272 + $0xe8] sm:$0xff]
        %v2878 = vld [vmem:[%s272 + $0xf0] sm:$0xff]
        %v2879 = vld [vmem:[%s272 + $0xf8] sm:$0xff]
        %v2880 = vld [vmem:[%s272 + $0x100] sm:$0xff]
        %v2881 = vld [vmem:[%s272 + $0x108] sm:$0xff]
        %v2882 = vld [vmem:[%s272 + $0x110] sm:$0xff]
        %v2883 = vld [vmem:[%s272 + $0x118] sm:$0xff]
        %v2884 = vld [vmem:[%s272 + $0x120] sm:$0xff]
        %v2885 = vld [vmem:[%s272 + $0x128] sm:$0xff]
        %v2886 = vld [vmem:[%s272 + $0x130] sm:$0xff]
        %v2887 = vld [vmem:[%s272 + $0x138] sm:$0xff]
        %v2888 = vld [vmem:[%s272 + $0x140] sm:$0xff]
        %v2889 = vld [vmem:[%s272 + $0x148] sm:$0xff]
        %v2890 = vld [vmem:[%s272 + $0x150] sm:$0xff]
        %v2891 = vld [vmem:[%s272 + $0x158] sm:$0xff]
        %v2892 = vld [vmem:[%s272 + $0x160] sm:$0xff]
        %v2893 = vld [vmem:[%s272 + $0x168] sm:$0xff]
        %v2894 = vld [vmem:[%s272 + $0x170] sm:$0xff]
        %v2895 = vld [vmem:[%s272 + $0x178] sm:$0xff]
        %v2896 = vld [vmem:[%s272 + $0x180] sm:$0xff]
        %v2897 = vld [vmem:[%s272 + $0x188] sm:$0xff]
        %v2898 = vld [vmem:[%s272 + $0x190] sm:$0xff]
        %v2899 = vld [vmem:[%s272 + $0x198] sm:$0xff]
        %v2900 = vld [vmem:[%s272 + $0x1a0] sm:$0xff]
        %v2901 = vld [vmem:[%s272 + $0x1a8] sm:$0xff]
        %v2902 = vld [vmem:[%s272 + $0x1b0] sm:$0xff]
        %v2903 = vld [vmem:[%s272 + $0x1b8] sm:$0xff]
        %v2904 = vld [vmem:[%s272 + $0x1c0] sm:$0xff]
        %v2905 = vld [vmem:[%s272 + $0x1c8] sm:$0xff]
        %v2906 = vld [vmem:[%s272 + $0x1d0] sm:$0xff]
        %v2907 = vld [vmem:[%s272 + $0x1d8] sm:$0xff]
        %v2908 = vld [vmem:[%s272 + $0x1e0] sm:$0xff]
        %v2909 = vld [vmem:[%s272 + $0x1e8] sm:$0xff]
        %v2910 = vld [vmem:[%s272 + $0x1f0] sm:$0xff]
        %v2911 = vld [vmem:[%s272 + $0x1f8] sm:$0xff]
        %2912 = vmatprep.subr.mxu0 0.0
        %2913 = vmatpush1.msra.mxu0 %v2848
        %2914 = vmatprep.subr.mxu0 0.0
        %2915 = vmatpush1.msra.mxu0 %v2849
        %2916 = vmatprep.subr.mxu0 0.0
        %2917 = vmatpush1.msra.mxu0 %v2850
        %2918 = vmatprep.subr.mxu0 0.0
        %2919 = vmatpush1.msra.mxu0 %v2851
        %2920 = vmatprep.subr.mxu0 0.0
        %2921 = vmatpush1.msra.mxu0 %v2852
        %2922 = vmatprep.subr.mxu0 0.0
        %2923 = vmatpush1.msra.mxu0 %v2853
        %2924 = vmatprep.subr.mxu0 0.0
        %2925 = vmatpush1.msra.mxu0 %v2854
        %2926 = vmatprep.subr.mxu0 0.0
        %2927 = vmatpush1.msra.mxu0 %v2855
        %2928 = vmatprep.subr.mxu0 0.0
        %2929 = vmatpush1.msra.mxu0 %v2856
        %2930 = vmatprep.subr.mxu0 0.0
        %2931 = vmatpush1.msra.mxu0 %v2857
        %2932 = vmatprep.subr.mxu0 0.0
        %2933 = vmatpush1.msra.mxu0 %v2858
        %2934 = vmatprep.subr.mxu0 0.0
        %2935 = vmatpush1.msra.mxu0 %v2859
        %2936 = vmatprep.subr.mxu0 0.0
        %2937 = vmatpush1.msra.mxu0 %v2860
        %2938 = vmatprep.subr.mxu0 0.0
        %2939 = vmatpush1.msra.mxu0 %v2861
        %2940 = vmatprep.subr.mxu0 0.0
        %2941 = vmatpush1.msra.mxu0 %v2862
        %2942 = vmatprep.subr.mxu0 0.0
        %2943 = vmatpush1.msra.mxu0 %v2863
        %2944 = vmatprep.subr.mxu0 0.0
        %2945 = vmatpush1.msra.mxu0 %v2864
        %2946 = vmatprep.subr.mxu0 0.0
        %2947 = vmatpush1.msra.mxu0 %v2865
        %2948 = vmatprep.subr.mxu0 0.0
        %2949 = vmatpush1.msra.mxu0 %v2866
        %2950 = vmatprep.subr.mxu0 0.0
        %2951 = vmatpush1.msra.mxu0 %v2867
        %2952 = vmatprep.subr.mxu0 0.0
        %2953 = vmatpush1.msra.mxu0 %v2868
        %2954 = vmatprep.subr.mxu0 0.0
        %2955 = vmatpush1.msra.mxu0 %v2869
        %2956 = vmatprep.subr.mxu0 0.0
        %2957 = vmatpush1.msra.mxu0 %v2870
        %2958 = vmatprep.subr.mxu0 0.0
        %2959 = vmatpush1.msra.mxu0 %v2871
        %2960 = vmatprep.subr.mxu0 0.0
        %2961 = vmatpush1.msra.mxu0 %v2872
        %2962 = vmatprep.subr.mxu0 0.0
        %2963 = vmatpush1.msra.mxu0 %v2873
        %2964 = vmatprep.subr.mxu0 0.0
        %2965 = vmatpush1.msra.mxu0 %v2874
        %2966 = vmatprep.subr.mxu0 0.0
        %2967 = vmatpush1.msra.mxu0 %v2875
        %2968 = vmatprep.subr.mxu0 0.0
        %2969 = vmatpush1.msra.mxu0 %v2876
        %2970 = vmatprep.subr.mxu0 0.0
        %2971 = vmatpush1.msra.mxu0 %v2877
        %2972 = vmatprep.subr.mxu0 0.0
        %2973 = vmatpush1.msra.mxu0 %v2878
        %2974 = vmatprep.subr.mxu0 0.0
        %2975 = vmatpush1.msra.mxu0 %v2879
        %2976 = vmatprep.mubr.f32.mxu0 %v2844
        %2977 = vmatmul.mubr.f32.gmra.mrb[0].mxu0 %v2843
        %v2978 = vpop.f32.mrb[0].mxu0
        %v2979 = vadd.f32 0.0, %v2978
        %v2980 = vpop.f32.mrb[0].mxu0
        %2981 = vdwg.mxu0
        %2982 = vmatprep.subr.mxu0 0.0
        %2983 = vmatpush1.msra.mxu0 %v2880
        %2984 = vmatprep.subr.mxu0 0.0
        %2985 = vmatpush1.msra.mxu0 %v2881
        %2986 = vmatprep.subr.mxu0 0.0
        %2987 = vmatpush1.msra.mxu0 %v2882
        %2988 = vmatprep.subr.mxu0 0.0
        %2989 = vmatpush1.msra.mxu0 %v2883
        %2990 = vmatprep.subr.mxu0 0.0
        %2991 = vmatpush1.msra.mxu0 %v2884
        %2992 = vmatprep.subr.mxu0 0.0
        %2993 = vmatpush1.msra.mxu0 %v2885
        %2994 = vmatprep.subr.mxu0 0.0
        %2995 = vmatpush1.msra.mxu0 %v2886
        %2996 = vmatprep.subr.mxu0 0.0
        %2997 = vmatpush1.msra.mxu0 %v2887
        %2998 = vmatprep.subr.mxu0 0.0
        %2999 = vmatpush1.msra.mxu0 %v2888
        %3000 = vmatprep.subr.mxu0 0.0
        %3001 = vmatpush1.msra.mxu0 %v2889
        %3002 = vmatprep.subr.mxu0 0.0
        %3003 = vmatpush1.msra.mxu0 %v2890
        %3004 = vmatprep.subr.mxu0 0.0
        %3005 = vmatpush1.msra.mxu0 %v2891
        %3006 = vmatprep.subr.mxu0 0.0
        %3007 = vmatpush1.msra.mxu0 %v2892
        %3008 = vmatprep.subr.mxu0 0.0
        %3009 = vmatpush1.msra.mxu0 %v2893
        %3010 = vmatprep.subr.mxu0 0.0
        %3011 = vmatpush1.msra.mxu0 %v2894
        %3012 = vmatprep.subr.mxu0 0.0
        %3013 = vmatpush1.msra.mxu0 %v2895
        %3014 = vmatprep.subr.mxu0 0.0
        %3015 = vmatpush1.msra.mxu0 %v2896
        %3016 = vmatprep.subr.mxu0 0.0
        %3017 = vmatpush1.msra.mxu0 %v2897
        %3018 = vmatprep.subr.mxu0 0.0
        %3019 = vmatpush1.msra.mxu0 %v2898
        %3020 = vmatprep.subr.mxu0 0.0
        %3021 = vmatpush1.msra.mxu0 %v2899
        %3022 = vmatprep.subr.mxu0 0.0
        %3023 = vmatpush1.msra.mxu0 %v2900
        %3024 = vmatprep.subr.mxu0 0.0
        %3025 = vmatpush1.msra.mxu0 %v2901
        %3026 = vmatprep.subr.mxu0 0.0
        %3027 = vmatpush1.msra.mxu0 %v2902
        %3028 = vmatprep.subr.mxu0 0.0
        %3029 = vmatpush1.msra.mxu0 %v2903
        %3030 = vmatprep.subr.mxu0 0.0
        %3031 = vmatpush1.msra.mxu0 %v2904
        %3032 = vmatprep.subr.mxu0 0.0
        %3033 = vmatpush1.msra.mxu0 %v2905
        %3034 = vmatprep.subr.mxu0 0.0
        %3035 = vmatpush1.msra.mxu0 %v2906
        %3036 = vmatprep.subr.mxu0 0.0
        %3037 = vmatpush1.msra.mxu0 %v2907
        %3038 = vmatprep.subr.mxu0 0.0
        %3039 = vmatpush1.msra.mxu0 %v2908
        %3040 = vmatprep.subr.mxu0 0.0
        %3041 = vmatpush1.msra.mxu0 %v2909
        %3042 = vmatprep.subr.mxu0 0.0
        %3043 = vmatpush1.msra.mxu0 %v2910
        %3044 = vmatprep.subr.mxu0 0.0
        %3045 = vmatpush1.msra.mxu0 %v2911
        %3046 = vmatprep.mubr.f32.mxu0 %v2846
        %3047 = vmatmul.mubr.f32.gmra.mrb[0].mxu0 %v2845
        %v3048 = vpop.f32.mrb[0].mxu0
        %v3049 = vadd.f32 %v2979, %v3048
        %v3050 = vpop.f32.mrb[0].mxu0
        %3051 = vdwg.mxu0
        %v3052 = vadd.f32 %v2847, %v3049
        %vm3053 = vcmask 15360
        %3054 = vst.msk [vmem:[#allocation3] sm:$0xff] %vm3053, %v3052
        // Predicated region
        $region46: #{roberta_classification_head.1} parent=31 // pred_check
          %p3055 = pneg %p279
        $region47: #{roberta_classification_head.1} parent=31 // pred_check_branch
          %3057 = sbr.rel (%p3055) target = $region49
        $region48: #{roberta_classification_head.1} parent=31 // pred_region
          %v3058 = vld [vmem:[#allocation3] sm:$0xff]
          %3059 = vst.msk [vmem:[%s278] sm:$0xff] %vm3053, %v3058
        $region49: #{roberta_classification_head.1} parent=31 // pred_fallthru
          _
        %p3060 = scmp.lt.s32.totalorder %s25, 1
        %s3061 = scalar_select %p3060, %s25, 1
        %s3062 = smul.addr %s3061, 8
        %s3063 = scalar_lea.vmem %s4, %s3062
        // Predicated region
        $region50: #{roberta_classification_head.1} parent=31 // pred_check
          %p3064 = pneg %p135
        $region51: #{roberta_classification_head.1} parent=31 // pred_check_branch
          %3066 = sbr.rel (%p3064) target = $region53
        $region52: #{roberta_classification_head.1} parent=31 // pred_region
          _
        $region53: #{roberta_classification_head.1} parent=31 // pred_fallthru
          _
      $region32: #{roberta_classification_head.1} parent=5 // pred_fallthru
        _
      %p3067 = scmp.le.s32.totalorder 2, %s16
      // Predicated region
      $region54: #{roberta_classification_head.1} parent=5 // pred_check
        %p3068 = pneg %p3067
      $region55: #{roberta_classification_head.1} parent=5 // pred_check_branch
        %3070 = sbr.rel (%p3068) target = $region57
      $region56: #{roberta_classification_head.1} parent=5 // pred_region
        %s3071 = ssub.s32 %s16, 2
        // Predicated region
        $region58: #{roberta_classification_head.1} parent=56 // pred_check
          %p3072 = pneg %p141
        $region59: #{roberta_classification_head.1} parent=56 // pred_check_branch
          %3074 = sbr.rel (%p3072) target = $region61
        $region60: #{roberta_classification_head.1} parent=56 // pred_region
          %p3075 = scmp.lt.s32.totalorder %s27, 1
          %s3076 = scalar_select %p3075, %s27, 1
          %s3077 = smul.addr %s3076, 8
          %s3078 = scalar_lea.vmem %s4, %s3077
        $region61: #{roberta_classification_head.1} parent=56 // pred_fallthru
          _
      $region57: #{roberta_classification_head.1} parent=5 // pred_fallthru
        _
    $region6: #{roberta_classification_head.1} parent=1 // loop_footer
      %s20 = sadd.s32 1, %s16
    $region7: #{roberta_classification_head.1} parent=1 // loop_footer_branch
      %15 = sbr.rel target = $region3
    $region8: #{roberta_classification_head.1} parent=1 // loop_exit
      _
    %3079 = vsyncpa [#allocation5], 1
    %s3080 = scalar_lea.sflag [#allocation5], 1
    %3081 = vsyncpa %s3080, 1
    %3082 = vsyncpa [#allocation7], 1
    %s3083 = scalar_lea.sflag [#allocation7], 1
    %3084 = vsyncpa %s3083, 1

</llo_original>
